<compile_context>
chip_gen: v7x
topology: tpu7x:2x2x1
jax: 0.10.0
libtpu: 0.0.40
codegen_flags: <defaults>
</compile_context>

<pallas_src>
import jax
import jax.numpy as jnp
from jax.experimental import pallas as pl
from jax.experimental.pallas import tpu as pltpu


# ----------------------------------------------------------------------------
# Config (mirrors the cfg fields used by NeuralRadianceField.__init__)
# ----------------------------------------------------------------------------
class Cfg:
    n_harmonic_functions_xyz = 6
    n_harmonic_functions_dir = 4
    n_layers_xyz = 4
    n_hidden_neurons_xyz = 32
    n_hidden_neurons_dir = 16
    append_xyz = (2,)


def _round_up(x, m):
    return (x + m - 1) // m * m


# ----------------------------------------------------------------------------
# Parameters (torch.nn.Linear-style init, weights stored (out, in))
# ----------------------------------------------------------------------------
def _linear_init(key, fan_in, fan_out):
    kw, kb = jax.random.split(key)
    bound = 1.0 / (fan_in ** 0.5)
    W = jax.random.uniform(kw, (fan_out, fan_in), jnp.float32, -bound, bound)
    b = jax.random.uniform(kb, (fan_out,), jnp.float32, -bound, bound)
    return W, b


def make_params(key, cfg):
    H, Hd = cfg.n_harmonic_functions_xyz, cfg.n_harmonic_functions_dir
    emb_xyz = 3 * (2 * H + 1)          # 39
    emb_dir = 3 * (2 * Hd + 1)         # 27
    hidden = cfg.n_hidden_neurons_xyz
    hidden_dir = cfg.n_hidden_neurons_dir
    skips = set(cfg.append_xyz)

    keys = jax.random.split(key, cfg.n_layers_xyz + 4)
    mlp = []
    for li in range(cfg.n_layers_xyz):
        if li == 0:
            din = emb_xyz
        elif li in skips:
            din = hidden + emb_xyz
        else:
            din = hidden
        mlp.append(_linear_init(keys[li], din, hidden))

    Wd, _ = _linear_init(keys[-4], hidden, 1)
    bd = jnp.zeros((1,), jnp.float32)                 # density bias zeroed in __init__
    Wc1, bc1 = _linear_init(keys[-3], hidden, hidden)
    Wr, br = _linear_init(keys[-2], hidden + emb_dir, hidden_dir)   # LinearWithRepeat
    Wc2, bc2 = _linear_init(keys[-1], hidden_dir, 3)

    freqs_xyz = 2.0 ** jnp.arange(H, dtype=jnp.float32)
    freqs_dir = 2.0 ** jnp.arange(Hd, dtype=jnp.float32)
    return dict(mlp=mlp, Wd=Wd, bd=bd, Wc1=Wc1, bc1=bc1, Wr=Wr, br=br,
                Wc2=Wc2, bc2=bc2, freqs_xyz=freqs_xyz, freqs_dir=freqs_dir)


# ----------------------------------------------------------------------------
# Pack every weight / bias / frequency matrix into one (rows, 32) f32 slab.
# Each block starts at an 8-aligned row offset; unused columns are zero.
# ----------------------------------------------------------------------------
def _pack_weight_slab(params, cfg):
    H, Hd = cfg.n_harmonic_functions_xyz, cfg.n_harmonic_functions_dir
    hidden = cfg.n_hidden_neurons_xyz
    skips = set(cfg.append_xyz)

    # Block-diagonal frequency matrices (torch channel-major emb ordering):
    # emb[ch*H + h] = x[ch] * freqs[h]
    Fx = jnp.zeros((3 * H, 3), jnp.float32)
    Fd = jnp.zeros((3 * Hd, 3), jnp.float32)
    for ch in range(3):
        Fx = Fx.at[ch * H:(ch + 1) * H, ch].set(params["freqs_xyz"])
        Fd = Fd.at[ch * Hd:(ch + 1) * Hd, ch].set(params["freqs_dir"])

    entries = [("Fxyz", Fx), ("Fdir", Fd)]
    for li, (W, b) in enumerate(params["mlp"]):
        b2 = b.reshape(-1, 1)
        if li == 0:
            entries += [(f"L{li}_s", W[:, :3 * H]),
                        (f"L{li}_c", W[:, 3 * H:6 * H]),
                        (f"L{li}_x", W[:, 6 * H:]),
                        (f"L{li}_b", b2)]
        elif li in skips:
            o = hidden
            entries += [(f"L{li}_y", W[:, :o]),
                        (f"L{li}_s", W[:, o:o + 3 * H]),
                        (f"L{li}_c", W[:, o + 3 * H:o + 6 * H]),
                        (f"L{li}_x", W[:, o + 6 * H:]),
                        (f"L{li}_b", b2)]
        else:
            entries += [(f"L{li}_w", W), (f"L{li}_b", b2)]

    entries += [
        ("Wd", params["Wd"]), ("bd", params["bd"].reshape(-1, 1)),
        ("Wc1", params["Wc1"]), ("bc1", params["bc1"].reshape(-1, 1)),
        ("Wr_int", params["Wr"][:, :hidden]),
        ("Wr_s", params["Wr"][:, hidden:hidden + 3 * Hd]),
        ("Wr_c", params["Wr"][:, hidden + 3 * Hd:hidden + 6 * Hd]),
        ("Wr_d", params["Wr"][:, hidden + 6 * Hd:]),
        ("br", params["br"].reshape(-1, 1)),
        ("Wc2", params["Wc2"]), ("bc2", params["bc2"].reshape(-1, 1)),
    ]

    lanes = max(int(a.shape[1]) for _, a in entries)   # = hidden = 32
    offsets = {}
    blocks = []
    off = 0
    for name, a in entries:
        a = jnp.asarray(a, jnp.float32)
        r, c = int(a.shape[0]), int(a.shape[1])
        rpad = _round_up(r, 8)
        offsets[name] = (off, r, c)
        blocks.append(jnp.zeros((rpad, lanes), jnp.float32).at[:r, :c].set(a))
        off += rpad
    slab = jnp.concatenate(blocks, axis=0)
    return slab, offsets


# ----------------------------------------------------------------------------
# Kernel: everything is (channels, tile_n) with points along lanes.
# ----------------------------------------------------------------------------
def build_kernel(offsets, n_layers, skips, use_bf16):
    skips = frozenset(skips)

    def getw(w_ref, name):
        off, r, c = offsets[name]
        return w_ref[off:off + r, 0:c]

    def kernel(x_ref, d_ref, w_ref, out_ref):
        x = x_ref[...]                        # (3, T) f32 sample points
        d = d_ref[...]                        # (3, T) f32 per-point directions

        def mm(name, act, cast=True):
            W = getw(w_ref, name)
            if use_bf16 and cast:
                W = W.astype(jnp.bfloat16)
                act = act.astype(jnp.bfloat16)
            return jnp.dot(W, act, preferred_element_type=jnp.float32)

        # ---- xyz harmonic embedding (phase math stays f32) ----
        emb = mm("Fxyz", x, cast=False)       # (3H, T): [x0*f0..x0*fH, x1*f0..]
        s = jnp.sin(emb)
        c = jnp.cos(emb)

        def harm_mm(pfx):
            # == W @ concat([sin, cos, x]) realised as split matmuls
            return mm(pfx + "_s", s) + mm(pfx + "_c", c) + mm(pfx + "_x", x)

        # ---- MLP with input skips ----
        y = None
        for li in range(n_layers):
            if li == 0:
                pre = harm_mm(f"L{li}")
            elif li in skips:
                pre = mm(f"L{li}_y", y) + harm_mm(f"L{li}")
            else:
                pre = mm(f"L{li}_w", y)
            y = jnp.maximum(pre + getw(w_ref, f"L{li}_b"), 0.0)   # (hidden, T)

        # ---- density head: relu(Linear(hidden, 1)) ----
        density = jnp.maximum(mm("Wd", y) + getw(w_ref, "bd"), 0.0)        # (1, T)

        # ---- color head ----
        # intermedia = color_layer_1(features)   (no activation)
        inter = mm("Wc1", y) + getw(w_ref, "bc1")                          # (hidden, T)
        # direction harmonic embedding (f32 phases)
        embd = mm("Fdir", d, cast=False)                                   # (3Hd, T)
        sd = jnp.sin(embd)
        cd = jnp.cos(embd)
        # LinearWithRepeat(intermedia, dir_harm) -> ReLU
        h = jnp.maximum(
            mm("Wr_int", inter) + mm("Wr_s", sd) + mm("Wr_c", cd)
            + mm("Wr_d", d) + getw(w_ref, "br"), 0.0)                      # (hdir, T)
        # Linear(hdir, 3) -> Sigmoid
        colors = jax.nn.sigmoid(mm("Wc2", h) + getw(w_ref, "bc2"))         # (3, T)

        # Single lane-dense (4, T) output slab: row 0 density, rows 1..3 rgb.
        out_ref[0:1, :] = density.astype(out_ref.dtype)
        out_ref[1:1 + colors.shape[0], :] = colors.astype(out_ref.dtype)

    return kernel


# ----------------------------------------------------------------------------
# Pallas wrapper
# ----------------------------------------------------------------------------
def nerf_forward_pallas(sample_points, directions, params, cfg,
                        tile_n=1024, use_bf16=True):
    out_batch = sample_points.shape[:-1]            # (..., n_pts)
    x = sample_points.reshape(-1, 3).astype(jnp.float32)
    # Broadcast per-ray directions to per-point (identical to LinearWithRepeat's
    # unsqueeze(-2) broadcast, just recomputed per point).
    d = jnp.broadcast_to(directions[..., None, :].astype(jnp.float32),
                         sample_points.shape).reshape(-1, 3)
    N = x.shape[0]

    # Lane-dense layout: points along lanes.
    xT = x.T                                        # (3, N)
    dT = d.T                                        # (3, N)

    tile = max(128, min(_round_up(tile_n, 128), _round_up(N, 128)))
    n_pad = _round_up(N, tile)
    if n_pad != N:
        xT = jnp.pad(xT, ((0, 0), (0, n_pad - N)))
        dT = jnp.pad(dT, ((0, 0), (0, n_pad - N)))

    slab, offsets = _pack_weight_slab(params, cfg)
    kernel = build_kernel(offsets, cfg.n_layers_xyz, cfg.append_xyz, use_bf16)

    out = pl.pallas_call(
        kernel,
        out_shape=jax.ShapeDtypeStruct((4, n_pad), jnp.float32),
        grid_spec=pltpu.PrefetchScalarGridSpec(
            num_scalar_prefetch=0,
            grid=(n_pad // tile,),
            in_specs=[
                pl.BlockSpec((3, tile), lambda i: (0, i)),        # points
                pl.BlockSpec((3, tile), lambda i: (0, i)),        # directions
                pl.BlockSpec(slab.shape, lambda i: (0, 0)),       # weight slab (resident)
            ],
            out_specs=pl.BlockSpec((4, tile), lambda i: (0, i)),
        ),
        compiler_params=pltpu.CompilerParams(
            dimension_semantics=("parallel",)),
    )(xT, dT, slab)

    density = out[0, :N].reshape(*out_batch, 1)
    colors = out[1:4, :N].T.reshape(*out_batch, 3)
    return {"density": density, "feature": colors}


# ----------------------------------------------------------------------------
# Pure-JAX reference (direct transcription of the torch module)
# ----------------------------------------------------------------------------
def _harmonic(v, freqs):
    emb = (v[..., None] * freqs).reshape(*v.shape[:-1], -1)
    return jnp.concatenate([jnp.sin(emb), jnp.cos(emb), v], axis=-1)


def nerf_forward_reference(sample_points, directions, params, cfg):
    skips = set(cfg.append_xyz)
    x = sample_points.reshape(-1, 3).astype(jnp.float32)
    d = jnp.broadcast_to(directions[..., None, :].astype(jnp.float32),
                         sample_points.shape).reshape(-1, 3)

    harm = _harmonic(x, params["freqs_xyz"])                      # (N, 39)
    y = harm
    for li, (W, b) in enumerate(params["mlp"]):
        if li in skips:
            y = jnp.concatenate([y, harm], axis=-1)
        y = jnp.maximum(y @ W.T + b, 0.0)

    density = jnp.maximum(y @ params["Wd"].T + params["bd"], 0.0)
    inter = y @ params["Wc1"].T + params["bc1"]
    dh = _harmonic(d, params["freqs_dir"])                        # (N, 27)
    h = jnp.maximum(
        jnp.concatenate([inter, dh], axis=-1) @ params["Wr"].T + params["br"], 0.0)
    colors = jax.nn.sigmoid(h @ params["Wc2"].T + params["bc2"])

    ob = sample_points.shape[:-1]
    return {"density": density.reshape(*ob, 1),
            "feature": colors.reshape(*ob, 3)}


# ----------------------------------------------------------------------------
if __name__ == "__main__":
    cfg = Cfg()
    key = jax.random.PRNGKey(0)
    kp, kx, kd = jax.random.split(key, 3)

    params = make_params(kp, cfg)

    # ray_bundle.sample_points: (batch, n_rays, n_pts_per_ray, 3)
    # ray_bundle.directions:    (batch, n_rays, 3)
    batch, n_rays, n_pts = 2, 8, 8
    sample_points = jax.random.normal(kx, (batch, n_rays, n_pts, 3), jnp.float32)
    directions = jax.random.normal(kd, (batch, n_rays, 3), jnp.float32)

    ref = nerf_forward_reference(sample_points, directions, params, cfg)

    # f32 MXU-operand path — tight check against the reference.
    out_f32 = nerf_forward_pallas(sample_points, directions, params, cfg,
                                  tile_n=1024, use_bf16=False)
    jax.block_until_ready(out_f32)
    assert out_f32["density"].shape == (batch, n_rays, n_pts, 1)
    assert out_f32["feature"].shape == (batch, n_rays, n_pts, 3)
    assert jnp.allclose(out_f32["density"], ref["density"], atol=1e-4, rtol=1e-4)
    assert jnp.allclose(out_f32["feature"], ref["feature"], atol=1e-4, rtol=1e-4)

    # bf16 MXU-operand path (f32 accumulation, f32 harmonic phases) — loose check.
    out_bf16 = nerf_forward_pallas(sample_points, directions, params, cfg,
                                   tile_n=1024, use_bf16=True)
    jax.block_until_ready(out_bf16)
    assert out_bf16["density"].shape == (batch, n_rays, n_pts, 1)
    assert out_bf16["feature"].shape == (batch, n_rays, n_pts, 3)
    assert jnp.allclose(out_bf16["density"], ref["density"], atol=5e-2, rtol=0)
    assert jnp.allclose(out_bf16["feature"], ref["feature"], atol=5e-2, rtol=0)

    print("KERNEL_OK")
</pallas_src>

<mosaic_0001>
module attributes {stable_mosaic.version = 11 : i64} {
  func.func @kernel(%arg0: i32, %arg1: memref<3x128xf32, #tpu.memory_space<vmem>>, %arg2: memref<3x128xf32, #tpu.memory_space<vmem>>, %arg3: memref<632x32xf32, #tpu.memory_space<vmem>>, %arg4: memref<4x128xf32, #tpu.memory_space<vmem>>) attributes {dimension_semantics = [#tpu.dimension_semantics<parallel>], iteration_bounds = array<i64: 1>, scalar_prefetch = 0 : i64, scratch_operands = 0 : i64, tpu.core_type = #tpu.core_type<tc>, window_params = [{transform_indices = @transform_0, window_bounds = array<i64: 3, 128>}, {transform_indices = @transform_1, window_bounds = array<i64: 3, 128>}, {pipeline_mode = #tpu.pipeline_mode<synchronous>, transform_indices = @transform_2, window_bounds = array<i64: 632, 32>}, {transform_indices = @transform_3, window_bounds = array<i64: 4, 128>}]} {
    %c0 = arith.constant 0 : index
    %c0_0 = arith.constant 0 : index
    %0 = vector.load %arg1[%c0, %c0_0] : memref<3x128xf32, #tpu.memory_space<vmem>>, vector<3x128xf32>
    %c0_1 = arith.constant 0 : index
    %c0_2 = arith.constant 0 : index
    %1 = vector.load %arg2[%c0_1, %c0_2] : memref<3x128xf32, #tpu.memory_space<vmem>>, vector<3x128xf32>
    %c0_3 = arith.constant 0 : index
    %c0_4 = arith.constant 0 : index
    %2 = vector.load %arg3[%c0_3, %c0_4] : memref<632x32xf32, #tpu.memory_space<vmem>>, vector<18x3xf32>
    %cst = arith.constant dense<0.000000e+00> : vector<18x128xf32>
    %3 = tpu.matmul %2, %0, %cst {dimension_numbers = #tpu.dot_dimension_numbers<[1], [0], [0], [1], [0, 0, 1, 1], [], []>} : vector<18x3xf32>, vector<3x128xf32>, vector<18x128xf32> -> vector<18x128xf32>
    %4 = math.sin %3 : vector<18x128xf32>
    %5 = math.cos %3 : vector<18x128xf32>
    %c40 = arith.constant 40 : index
    %c0_5 = arith.constant 0 : index
    %6 = vector.load %arg3[%c40, %c0_5] : memref<632x32xf32, #tpu.memory_space<vmem>>, vector<32x18xf32>
    %cst_6 = arith.constant dense<0.000000e+00> : vector<32x128xf32>
    %7 = tpu.matmul %6, %4, %cst_6 {dimension_numbers = #tpu.dot_dimension_numbers<[1], [0], [0], [1], [0, 0, 1, 1], [], []>} : vector<32x18xf32>, vector<18x128xf32>, vector<32x128xf32> -> vector<32x128xf32>
    %c72 = arith.constant 72 : index
    %c0_7 = arith.constant 0 : index
    %8 = vector.load %arg3[%c72, %c0_7] : memref<632x32xf32, #tpu.memory_space<vmem>>, vector<32x18xf32>
    %cst_8 = arith.constant dense<0.000000e+00> : vector<32x128xf32>
    %9 = tpu.matmul %8, %5, %cst_8 {dimension_numbers = #tpu.dot_dimension_numbers<[1], [0], [0], [1], [0, 0, 1, 1], [], []>} : vector<32x18xf32>, vector<18x128xf32>, vector<32x128xf32> -> vector<32x128xf32>
    %10 = arith.addf %7, %9 : vector<32x128xf32>
    %c104 = arith.constant 104 : index
    %c0_9 = arith.constant 0 : index
    %11 = vector.load %arg3[%c104, %c0_9] : memref<632x32xf32, #tpu.memory_space<vmem>>, vector<32x3xf32>
    %cst_10 = arith.constant dense<0.000000e+00> : vector<32x128xf32>
    %12 = tpu.matmul %11, %0, %cst_10 {dimension_numbers = #tpu.dot_dimension_numbers<[1], [0], [0], [1], [0, 0, 1, 1], [], []>} : vector<32x3xf32>, vector<3x128xf32>, vector<32x128xf32> -> vector<32x128xf32>
    %13 = arith.addf %10, %12 : vector<32x128xf32>
    %c136 = arith.constant 136 : index
    %c0_11 = arith.constant 0 : index
    %14 = vector.load %arg3[%c136, %c0_11] : memref<632x32xf32, #tpu.memory_space<vmem>>, vector<32x1xf32>
    %15 = vector.broadcast %14 : vector<32x1xf32> to vector<32x128xf32>
    %16 = arith.addf %13, %15 : vector<32x128xf32>
    %cst_12 = arith.constant 0.000000e+00 : f32
    %17 = vector.broadcast %cst_12 : f32 to vector<32x128xf32>
    %18 = arith.maximumf %16, %17 : vector<32x128xf32>
    %c168 = arith.constant 168 : index
    %c0_13 = arith.constant 0 : index
    %19 = vector.load %arg3[%c168, %c0_13] : memref<632x32xf32, #tpu.memory_space<vmem>>, vector<32x32xf32>
    %cst_14 = arith.constant dense<0.000000e+00> : vector<32x128xf32>
    %20 = tpu.matmul %19, %18, %cst_14 {dimension_numbers = #tpu.dot_dimension_numbers<[1], [0], [0], [1], [0, 0, 1, 1], [], []>} : vector<32x32xf32>, vector<32x128xf32>, vector<32x128xf32> -> vector<32x128xf32>
    %c200 = arith.constant 200 : index
    %c0_15 = arith.constant 0 : index
    %21 = vector.load %arg3[%c200, %c0_15] : memref<632x32xf32, #tpu.memory_space<vmem>>, vector<32x1xf32>
    %22 = vector.broadcast %21 : vector<32x1xf32> to vector<32x128xf32>
    %23 = arith.addf %20, %22 : vector<32x128xf32>
    %cst_16 = arith.constant 0.000000e+00 : f32
    %24 = vector.broadcast %cst_16 : f32 to vector<32x128xf32>
    %25 = arith.maximumf %23, %24 : vector<32x128xf32>
    %c232 = arith.constant 232 : index
    %c0_17 = arith.constant 0 : index
    %26 = vector.load %arg3[%c232, %c0_17] : memref<632x32xf32, #tpu.memory_space<vmem>>, vector<32x32xf32>
    %cst_18 = arith.constant dense<0.000000e+00> : vector<32x128xf32>
    %27 = tpu.matmul %26, %25, %cst_18 {dimension_numbers = #tpu.dot_dimension_numbers<[1], [0], [0], [1], [0, 0, 1, 1], [], []>} : vector<32x32xf32>, vector<32x128xf32>, vector<32x128xf32> -> vector<32x128xf32>
    %c264 = arith.constant 264 : index
    %c0_19 = arith.constant 0 : index
    %28 = vector.load %arg3[%c264, %c0_19] : memref<632x32xf32, #tpu.memory_space<vmem>>, vector<32x18xf32>
    %cst_20 = arith.constant dense<0.000000e+00> : vector<32x128xf32>
    %29 = tpu.matmul %28, %4, %cst_20 {dimension_numbers = #tpu.dot_dimension_numbers<[1], [0], [0], [1], [0, 0, 1, 1], [], []>} : vector<32x18xf32>, vector<18x128xf32>, vector<32x128xf32> -> vector<32x128xf32>
    %c296 = arith.constant 296 : index
    %c0_21 = arith.constant 0 : index
    %30 = vector.load %arg3[%c296, %c0_21] : memref<632x32xf32, #tpu.memory_space<vmem>>, vector<32x18xf32>
    %cst_22 = arith.constant dense<0.000000e+00> : vector<32x128xf32>
    %31 = tpu.matmul %30, %5, %cst_22 {dimension_numbers = #tpu.dot_dimension_numbers<[1], [0], [0], [1], [0, 0, 1, 1], [], []>} : vector<32x18xf32>, vector<18x128xf32>, vector<32x128xf32> -> vector<32x128xf32>
    %32 = arith.addf %29, %31 : vector<32x128xf32>
    %c328 = arith.constant 328 : index
    %c0_23 = arith.constant 0 : index
    %33 = vector.load %arg3[%c328, %c0_23] : memref<632x32xf32, #tpu.memory_space<vmem>>, vector<32x3xf32>
    %cst_24 = arith.constant dense<0.000000e+00> : vector<32x128xf32>
    %34 = tpu.matmul %33, %0, %cst_24 {dimension_numbers = #tpu.dot_dimension_numbers<[1], [0], [0], [1], [0, 0, 1, 1], [], []>} : vector<32x3xf32>, vector<3x128xf32>, vector<32x128xf32> -> vector<32x128xf32>
    %35 = arith.addf %32, %34 : vector<32x128xf32>
    %36 = arith.addf %27, %35 : vector<32x128xf32>
    %c360 = arith.constant 360 : index
    %c0_25 = arith.constant 0 : index
    %37 = vector.load %arg3[%c360, %c0_25] : memref<632x32xf32, #tpu.memory_space<vmem>>, vector<32x1xf32>
    %38 = vector.broadcast %37 : vector<32x1xf32> to vector<32x128xf32>
    %39 = arith.addf %36, %38 : vector<32x128xf32>
    %cst_26 = arith.constant 0.000000e+00 : f32
    %40 = vector.broadcast %cst_26 : f32 to vector<32x128xf32>
    %41 = arith.maximumf %39, %40 : vector<32x128xf32>
    %c392 = arith.constant 392 : index
    %c0_27 = arith.constant 0 : index
    %42 = vector.load %arg3[%c392, %c0_27] : memref<632x32xf32, #tpu.memory_space<vmem>>, vector<32x32xf32>
    %cst_28 = arith.constant dense<0.000000e+00> : vector<32x128xf32>
    %43 = tpu.matmul %42, %41, %cst_28 {dimension_numbers = #tpu.dot_dimension_numbers<[1], [0], [0], [1], [0, 0, 1, 1], [], []>} : vector<32x32xf32>, vector<32x128xf32>, vector<32x128xf32> -> vector<32x128xf32>
    %c424 = arith.constant 424 : index
    %c0_29 = arith.constant 0 : index
    %44 = vector.load %arg3[%c424, %c0_29] : memref<632x32xf32, #tpu.memory_space<vmem>>, vector<32x1xf32>
    %45 = vector.broadcast %44 : vector<32x1xf32> to vector<32x128xf32>
    %46 = arith.addf %43, %45 : vector<32x128xf32>
    %cst_30 = arith.constant 0.000000e+00 : f32
    %47 = vector.broadcast %cst_30 : f32 to vector<32x128xf32>
    %48 = arith.maximumf %46, %47 : vector<32x128xf32>
    %c456 = arith.constant 456 : index
    %c0_31 = arith.constant 0 : index
    %49 = vector.load %arg3[%c456, %c0_31] : memref<632x32xf32, #tpu.memory_space<vmem>>, vector<1x32xf32>
    %cst_32 = arith.constant dense<0.000000e+00> : vector<1x128xf32>
    %50 = tpu.matmul %49, %48, %cst_32 {dimension_numbers = #tpu.dot_dimension_numbers<[1], [0], [0], [1], [0, 0, 1, 1], [], []>} : vector<1x32xf32>, vector<32x128xf32>, vector<1x128xf32> -> vector<1x128xf32>
    %c464 = arith.constant 464 : index
    %c0_33 = arith.constant 0 : index
    %51 = vector.load %arg3[%c464, %c0_33] : memref<632x32xf32, #tpu.memory_space<vmem>>, vector<1x1xf32>
    %52 = vector.broadcast %51 : vector<1x1xf32> to vector<1x128xf32>
    %53 = arith.addf %50, %52 : vector<1x128xf32>
    %cst_34 = arith.constant 0.000000e+00 : f32
    %54 = vector.broadcast %cst_34 : f32 to vector<1x128xf32>
    %55 = arith.maximumf %53, %54 : vector<1x128xf32>
    %c472 = arith.constant 472 : index
    %c0_35 = arith.constant 0 : index
    %56 = vector.load %arg3[%c472, %c0_35] : memref<632x32xf32, #tpu.memory_space<vmem>>, vector<32x32xf32>
    %cst_36 = arith.constant dense<0.000000e+00> : vector<32x128xf32>
    %57 = tpu.matmul %56, %48, %cst_36 {dimension_numbers = #tpu.dot_dimension_numbers<[1], [0], [0], [1], [0, 0, 1, 1], [], []>} : vector<32x32xf32>, vector<32x128xf32>, vector<32x128xf32> -> vector<32x128xf32>
    %c504 = arith.constant 504 : index
    %c0_37 = arith.constant 0 : index
    %58 = vector.load %arg3[%c504, %c0_37] : memref<632x32xf32, #tpu.memory_space<vmem>>, vector<32x1xf32>
    %59 = vector.broadcast %58 : vector<32x1xf32> to vector<32x128xf32>
    %60 = arith.addf %57, %59 : vector<32x128xf32>
    %c24 = arith.constant 24 : index
    %c0_38 = arith.constant 0 : index
    %61 = vector.load %arg3[%c24, %c0_38] : memref<632x32xf32, #tpu.memory_space<vmem>>, vector<12x3xf32>
    %cst_39 = arith.constant dense<0.000000e+00> : vector<12x128xf32>
    %62 = tpu.matmul %61, %1, %cst_39 {dimension_numbers = #tpu.dot_dimension_numbers<[1], [0], [0], [1], [0, 0, 1, 1], [], []>} : vector<12x3xf32>, vector<3x128xf32>, vector<12x128xf32> -> vector<12x128xf32>
    %63 = math.sin %62 : vector<12x128xf32>
    %64 = math.cos %62 : vector<12x128xf32>
    %c536 = arith.constant 536 : index
    %c0_40 = arith.constant 0 : index
    %65 = vector.load %arg3[%c536, %c0_40] : memref<632x32xf32, #tpu.memory_space<vmem>>, vector<16x32xf32>
    %cst_41 = arith.constant dense<0.000000e+00> : vector<16x128xf32>
    %66 = tpu.matmul %65, %60, %cst_41 {dimension_numbers = #tpu.dot_dimension_numbers<[1], [0], [0], [1], [0, 0, 1, 1], [], []>} : vector<16x32xf32>, vector<32x128xf32>, vector<16x128xf32> -> vector<16x128xf32>
    %c552 = arith.constant 552 : index
    %c0_42 = arith.constant 0 : index
    %67 = vector.load %arg3[%c552, %c0_42] : memref<632x32xf32, #tpu.memory_space<vmem>>, vector<16x12xf32>
    %cst_43 = arith.constant dense<0.000000e+00> : vector<16x128xf32>
    %68 = tpu.matmul %67, %63, %cst_43 {dimension_numbers = #tpu.dot_dimension_numbers<[1], [0], [0], [1], [0, 0, 1, 1], [], []>} : vector<16x12xf32>, vector<12x128xf32>, vector<16x128xf32> -> vector<16x128xf32>
    %69 = arith.addf %66, %68 : vector<16x128xf32>
    %c568 = arith.constant 568 : index
    %c0_44 = arith.constant 0 : index
    %70 = vector.load %arg3[%c568, %c0_44] : memref<632x32xf32, #tpu.memory_space<vmem>>, vector<16x12xf32>
    %cst_45 = arith.constant dense<0.000000e+00> : vector<16x128xf32>
    %71 = tpu.matmul %70, %64, %cst_45 {dimension_numbers = #tpu.dot_dimension_numbers<[1], [0], [0], [1], [0, 0, 1, 1], [], []>} : vector<16x12xf32>, vector<12x128xf32>, vector<16x128xf32> -> vector<16x128xf32>
    %72 = arith.addf %69, %71 : vector<16x128xf32>
    %c584 = arith.constant 584 : index
    %c0_46 = arith.constant 0 : index
    %73 = vector.load %arg3[%c584, %c0_46] : memref<632x32xf32, #tpu.memory_space<vmem>>, vector<16x3xf32>
    %cst_47 = arith.constant dense<0.000000e+00> : vector<16x128xf32>
    %74 = tpu.matmul %73, %1, %cst_47 {dimension_numbers = #tpu.dot_dimension_numbers<[1], [0], [0], [1], [0, 0, 1, 1], [], []>} : vector<16x3xf32>, vector<3x128xf32>, vector<16x128xf32> -> vector<16x128xf32>
    %75 = arith.addf %72, %74 : vector<16x128xf32>
    %c600 = arith.constant 600 : index
    %c0_48 = arith.constant 0 : index
    %76 = vector.load %arg3[%c600, %c0_48] : memref<632x32xf32, #tpu.memory_space<vmem>>, vector<16x1xf32>
    %77 = vector.broadcast %76 : vector<16x1xf32> to vector<16x128xf32>
    %78 = arith.addf %75, %77 : vector<16x128xf32>
    %cst_49 = arith.constant 0.000000e+00 : f32
    %79 = vector.broadcast %cst_49 : f32 to vector<16x128xf32>
    %80 = arith.maximumf %78, %79 : vector<16x128xf32>
    %c616 = arith.constant 616 : index
    %c0_50 = arith.constant 0 : index
    %81 = vector.load %arg3[%c616, %c0_50] : memref<632x32xf32, #tpu.memory_space<vmem>>, vector<3x16xf32>
    %cst_51 = arith.constant dense<0.000000e+00> : vector<3x128xf32>
    %82 = tpu.matmul %81, %80, %cst_51 {dimension_numbers = #tpu.dot_dimension_numbers<[1], [0], [0], [1], [0, 0, 1, 1], [], []>} : vector<3x16xf32>, vector<16x128xf32>, vector<3x128xf32> -> vector<3x128xf32>
    %c624 = arith.constant 624 : index
    %c0_52 = arith.constant 0 : index
    %83 = vector.load %arg3[%c624, %c0_52] : memref<632x32xf32, #tpu.memory_space<vmem>>, vector<3x1xf32>
    %84 = vector.broadcast %83 : vector<3x1xf32> to vector<3x128xf32>
    %85 = arith.addf %82, %84 : vector<3x128xf32>
    %86 = arith.negf %85 : vector<3x128xf32>
    %87 = math.exp %86 : vector<3x128xf32>
    %cst_53 = arith.constant 1.000000e+00 : f32
    %88 = vector.broadcast %cst_53 : f32 to vector<3x128xf32>
    %89 = arith.addf %88, %87 : vector<3x128xf32>
    %90 = arith.divf %88, %89 : vector<3x128xf32>
    %c0_54 = arith.constant 0 : index
    %c0_55 = arith.constant 0 : index
    %91 = vector.load %arg4[%c0_54, %c0_55] : memref<4x128xf32, #tpu.memory_space<vmem>>, vector<1x128xf32>
    tpu.vector_store %arg4[%c0_54, %c0_55], %55 {strides = array<i32>} : memref<4x128xf32, #tpu.memory_space<vmem>>, vector<1x128xf32>,
    %c1 = arith.constant 1 : index
    %c0_56 = arith.constant 0 : index
    %92 = vector.load %arg4[%c1, %c0_56] : memref<4x128xf32, #tpu.memory_space<vmem>>, vector<3x128xf32>
    tpu.vector_store %arg4[%c1, %c0_56], %90 {strides = array<i32>} : memref<4x128xf32, #tpu.memory_space<vmem>>, vector<3x128xf32>,
    return
  }
  func.func @transform_0(%arg0: i32) -> (i32, i32) {
    %c0_i32 = arith.constant 0 : i32
    %c0_i32_0 = arith.constant 0 : i32
    return %c0_i32, %arg0 : i32, i32
  }
  func.func @transform_1(%arg0: i32) -> (i32, i32) {
    %c0_i32 = arith.constant 0 : i32
    %c0_i32_0 = arith.constant 0 : i32
    return %c0_i32, %arg0 : i32, i32
  }
  func.func @transform_2(%arg0: i32) -> (i32, i32) {
    %c0_i32 = arith.constant 0 : i32
    %c0_i32_0 = arith.constant 0 : i32
    %c0_i32_1 = arith.constant 0 : i32
    return %c0_i32, %c0_i32_0 : i32, i32
  }
  func.func @transform_3(%arg0: i32) -> (i32, i32) {
    %c0_i32 = arith.constant 0 : i32
    %c0_i32_0 = arith.constant 0 : i32
    return %c0_i32, %arg0 : i32, i32
  }
}

</mosaic_0001>

<llo_original>
// kernel: tpu_custom_call.1
$region0: #{tpu_custom_call.1}
  #allocation0 [shape = 'u32[]', space=smem, size = 0x4, offset = 0x4, fixed_abs, tag = 'smem constant byte address 0x4 - core index']
  #allocation1 [shape = 'u32[144,128]{1,0:T(1,128)}', space=vmem, size = 0x12000, scoped, tag = 'internal scratch']
  %s0 = inlined_call_operand.vmem [shape: f32[3,128], index: 0, kind: input, shape index: {}]
  %s1 = inlined_call_operand.vmem [shape: f32[3,128], index: 1, kind: input, shape index: {}]
  %s2 = inlined_call_operand.vmem [shape: f32[632,32], index: 2, kind: input, shape index: {}]
  %s3 = inlined_call_operand.hbm [shape: f32[4,128], index: 3, kind: output, shape index: {}]
  %s4 = sld [smem:[#allocation0]]
  $region22: #{tpu_custom_call.1} parent=0
    _
  %s6 = ssub.s32 1, %s4
  %s7 = scalar_select 0, %s6, %s4
  $region1: #{tpu_custom_call.1} parent=0
    #allocation2 [shape = 'u8[2048]{0}', space=vmem, size = 0x800, scoped, tag = 'output window, operand 0, single buffered']
    #allocation3 [shape = 's32[1]{0}', space=sflag, size = 0x4, scoped, tag = 'scoped memory for tpu_custom_call.1']
    %8 = vsyncpa [#allocation3], 0
    // Predicated region
    $region2: #{tpu_custom_call.1} parent=1 // pred_check
      _
    $region3: #{tpu_custom_call.1} parent=1 // pred_check_branch
      %10 = sbr.rel (0) target = $region5
    $region4: #{tpu_custom_call.1} parent=1 // pred_region
      _
    $region5: #{tpu_custom_call.1} parent=1 // pred_fallthru
      _
    // Predicated region
    $region6: #{tpu_custom_call.1} parent=1 // pred_check
      _
    $region7: #{tpu_custom_call.1} parent=1 // pred_check_branch
      %12 = sbr.rel (0) target = $region9
    $region8: #{tpu_custom_call.1} parent=1 // pred_region
      _
    $region9: #{tpu_custom_call.1} parent=1 // pred_fallthru
      _
    // Predicated region
    $region10: #{tpu_custom_call.1} parent=1 // pred_check
      _
    $region11: #{tpu_custom_call.1} parent=1 // pred_check_branch
      %14 = sbr.rel (0) target = $region13
    $region12: #{tpu_custom_call.1} parent=1 // pred_region
      _
    $region13: #{tpu_custom_call.1} parent=1 // pred_fallthru
      _
    %v15 = vld [vmem:[%s0] sm:$0x7]
    %v16 = vld [vmem:[%s1] sm:$0x7]
    %v17 = vld [vmem:[%s2] sm:$0xff]
    %v18 = vld [vmem:[%s2 + $0x8] sm:$0xff]
    %v19 = vld [vmem:[%s2 + $0x10] sm:$0x3]
    %vm20 = vcmask 23552
    %v22 = vsel %vm20, %v17, 0
    %v25 = vsel %vm20, %v18, 0
    %v28 = vsel %vm20, %v19, 0
    %vm30 = vcmask 1042432
    %v32 = vsel %vm30, %v15, 0
    %34 = vmatprep.subr.mxu0 0.0
    %35 = vmatpush1.msra.mxu0 %v32
    %36 = vmatprep.subr.mxu0 0.0
    %37 = vmatpush1.msra.mxu0 0.0
    %38 = vmatprep.subr.mxu0 0.0
    %39 = vmatpush1.msra.mxu0 0.0
    %40 = vmatprep.subr.mxu0 0.0
    %41 = vmatpush1.msra.mxu0 0.0
    %42 = vmatprep.subr.mxu0 0.0
    %43 = vmatpush1.msra.mxu0 0.0
    %44 = vmatprep.subr.mxu0 0.0
    %45 = vmatpush1.msra.mxu0 0.0
    %46 = vmatprep.subr.mxu0 0.0
    %47 = vmatpush1.msra.mxu0 0.0
    %48 = vmatprep.subr.mxu0 0.0
    %49 = vmatpush1.msra.mxu0 0.0
    %50 = vmatprep.subr.mxu0 0.0
    %51 = vmatpush1.msra.mxu0 0.0
    %52 = vmatprep.subr.mxu0 0.0
    %53 = vmatpush1.msra.mxu0 0.0
    %54 = vmatprep.subr.mxu0 0.0
    %55 = vmatpush1.msra.mxu0 0.0
    %56 = vmatprep.subr.mxu0 0.0
    %57 = vmatpush1.msra.mxu0 0.0
    %58 = vmatprep.subr.mxu0 0.0
    %59 = vmatpush1.msra.mxu0 0.0
    %60 = vmatprep.subr.mxu0 0.0
    %61 = vmatpush1.msra.mxu0 0.0
    %62 = vmatprep.subr.mxu0 0.0
    %63 = vmatpush1.msra.mxu0 0.0
    %64 = vmatprep.subr.mxu0 0.0
    %65 = vmatpush1.msra.mxu0 0.0
    %66 = vmatprep.subr.mxu0 0.0
    %67 = vmatpush1.msra.mxu0 0.0
    %68 = vmatprep.subr.mxu0 0.0
    %69 = vmatpush1.msra.mxu0 0.0
    %70 = vmatprep.subr.mxu0 0.0
    %71 = vmatpush1.msra.mxu0 0.0
    %72 = vmatprep.subr.mxu0 0.0
    %73 = vmatpush1.msra.mxu0 0.0
    %74 = vmatprep.subr.mxu0 0.0
    %75 = vmatpush1.msra.mxu0 0.0
    %76 = vmatprep.subr.mxu0 0.0
    %77 = vmatpush1.msra.mxu0 0.0
    %78 = vmatprep.subr.mxu0 0.0
    %79 = vmatpush1.msra.mxu0 0.0
    %80 = vmatprep.subr.mxu0 0.0
    %81 = vmatpush1.msra.mxu0 0.0
    %82 = vmatprep.subr.mxu0 0.0
    %83 = vmatpush1.msra.mxu0 0.0
    %84 = vmatprep.subr.mxu0 0.0
    %85 = vmatpush1.msra.mxu0 0.0
    %86 = vmatprep.subr.mxu0 0.0
    %87 = vmatpush1.msra.mxu0 0.0
    %88 = vmatprep.subr.mxu0 0.0
    %89 = vmatpush1.msra.mxu0 0.0
    %90 = vmatprep.subr.mxu0 0.0
    %91 = vmatpush1.msra.mxu0 0.0
    %92 = vmatprep.subr.mxu0 0.0
    %93 = vmatpush1.msra.mxu0 0.0
    %94 = vmatprep.subr.mxu0 0.0
    %95 = vmatpush1.msra.mxu0 0.0
    %96 = vmatprep.subr.mxu0 0.0
    %97 = vmatpush1.msra.mxu0 0.0
    %98 = vmatprep.mubr.f32.mxu0 0.0
    %99 = vmatmul.mubr.f32.gmra.mrb[0].mxu0 %v22
    %v100 = vpop.f32.mrb[0].mxu0
    %v101 = vadd.f32 0.0, %v100
    %v102 = vpop.f32.mrb[0].mxu0
    %103 = vmatprep.mubr.f32.mxu0 0.0
    %104 = vmatmul.mubr.f32.gmra.mrb[0].mxu0 %v25
    %v105 = vpop.f32.mrb[0].mxu0
    %v106 = vadd.f32 0.0, %v105
    %v107 = vpop.f32.mrb[0].mxu0
    %108 = vmatprep.mubr.f32.mxu0 0.0
    %109 = vmatmul.mubr.f32.gmra.mrb[0].mxu0 %v28
    %v110 = vpop.f32.mrb[0].mxu0
    %v111 = vadd.f32 0.0, %v110
    %v112 = vpop.f32.mrb[0].mxu0
    %113 = vdwg.mxu0
    %v114 = vand.u32 2147483647, %v101
    %vm115 = vcmp.le.f32.partialorder %v114, 0.7853982
    %vm116 = vcmp.lt.s32.totalorder %v101, 0
    %v117 = vand.u32 %v101, 2139095040
    %v118 = vshrl.u32 %v117, 23
    %v119 = vsub.s32 %v118, 127
    %v120 = vand.u32 2147483647, %v101
    %v121 = vand.u32 %v120, 8388607
    %v122 = vor.u32 %v121, 8388608
    %v123 = vsub.s32 0, %v122
    %v124 = vadd.s32 %v119, 1
    %vm125 = vcmp.gt.s32.totalorder %v124, 0
    %v126 = vsel %vm125, %v124, 0
    %v127 = vshrl.u32 %v126, 5
    %v128 = vand.u32 %v126, 31
    %v129 = vsub.s32 32, %v128
    %v130 = vshrl.u32 683565275, %v129
    %v131 = vshll.u32 683565275, %v128
    %v132 = vshrl.u32 2475754826, %v129
    %v133 = vor.u32 %v131, %v132
    %v134 = vshll.u32 2475754826, %v128
    %v135 = vshrl.u32 2131351028, %v129
    %v136 = vor.u32 %v134, %v135
    %v137 = vshll.u32 2131351028, %v128
    %v138 = vshrl.u32 2102212464, %v129
    %v139 = vor.u32 %v137, %v138
    %v140 = vshll.u32 2102212464, %v128
    %v141 = vshrl.u32 920167782, %v129
    %v142 = vor.u32 %v140, %v141
    %v143 = vshll.u32 920167782, %v128
    %v144 = vshrl.u32 1326507024, %v129
    %v145 = vor.u32 %v143, %v144
    %vm146 = vcmp.lt.s32.totalorder %v127, 1
    %vm147 = vcmp.lt.s32.totalorder %v127, 2
    %vm148 = vcmp.lt.s32.totalorder %v127, 3
    %vm149 = vcmp.lt.s32.totalorder %v127, 4
    %v150 = vsel %vm146, %v130, %v133
    %v151 = vsel %vm149, %v139, 2102212464
    %v152 = vsel %vm148, %v136, %v151
    %v153 = vsel %vm147, %v150, %v152
    %v154 = vsel %vm146, %v133, %v136
    %v155 = vsel %vm149, %v142, 920167782
    %v156 = vsel %vm148, %v139, %v155
    %v157 = vsel %vm147, %v154, %v156
    %v158 = vsel %vm146, %v136, %v139
    %v159 = vsel %vm149, %v145, 1326507024
    %v160 = vsel %vm148, %v142, %v159
    %v161 = vsel %vm147, %v158, %v160
    %v162 = vshll.u32 %v122, 8
    %v163 = vmul.u32.u64.compose %v162, %v161
    %v164 = vextract.low.u32 %v163
    %v165 = vextract.high.u32 %v163
    %v166 = vmul.u32.u64.compose %v162, %v157
    %v167 = vextract.low.u32 %v166
    %v168 = vextract.high.u32 %v166
    %v169 = vmul.u32 %v162, %v153
    %v170 = vadd.s32 %v165, %v167
    %vm171 = vc.u32 %v165, %v167
    %v172 = vadd.s32 %v168, 1
    %v173 = vsel %vm171, %v172, %v168
    %v174 = vadd.s32 %v169, %v173
    %v175 = vadd.s32 %v174, 536870912
    %v176 = vshrl.u32 %v175, 30
    %v177 = vshll.u32 %v176, 30
    %v178 = vsub.s32 %v174, %v177
    %vm179 = vcmp.lt.s32.totalorder %v178, 0
    %v180 = vsub.s32 0, %v178
    %v181 = vsel %vm179, %v180, %v178
    %v182 = vclz %v181
    %v183 = vsub.s32 %v182, 2
    %vm184 = vcmp.gt.s32.totalorder 0, %v183
    %v185 = vsel %vm184, 0, %v183
    %v186 = vsub.s32 32, %v185
    %v187 = vshll.u32 %v178, %v185
    %v188 = vshrl.u32 %v170, %v186
    %v189 = vor.u32 %v187, %v188
    %v190 = vsub.s32 4294967266, %v185
    %v191 = vadd.s32 %v190, 127
    %v192 = vshll.u32 %v191, 23
    %v193 = vor.u32 4788187, %v192
    %v194 = vand.u32 2147483647, %v193
    %v196 = vcvt.s32.f32 %v189
    %v197 = vmul.f32 %v196, %v194
    %v198 = vxor.u32 %v197, 2147483648
    %v199 = vsel %vm116, %v198, %v197
    %v200 = vsub.s32 4, %v176
    %v201 = vsel %vm116, %v200, %v176
    %v202 = vsel %vm115, %v101, %v199
    %v203 = vsel %vm115, 0, %v201
    %v204 = vcosq.f32.pop %v202
    %v205 = vsinq.f32.pop %v202
    %vm206 = vweird.f32 %v101
    %v207 = vadd.s32 %v203, 3
    %v208 = vand.u32 %v207, 3
    %vm209 = vcmp.lt.s32.totalorder %v208, 2
    %vm210 = vcmp.eq.s32.totalorder %v208, 0
    %v211 = vxor.u32 %v205, 2147483648
    %v212 = vsel %vm210, %v204, %v211
    %vm213 = vcmp.eq.s32.totalorder %v208, 2
    %v214 = vxor.u32 %v204, 2147483648
    %v215 = vsel %vm213, %v214, %v205
    %v216 = vsel %vm209, %v212, %v215
    %v217 = vsel %vm206, nan, %v216
    %v218 = vand.u32 2147483647, %v106
    %vm219 = vcmp.le.f32.partialorder %v218, 0.7853982
    %vm220 = vcmp.lt.s32.totalorder %v106, 0
    %v221 = vand.u32 %v106, 2139095040
    %v222 = vshrl.u32 %v221, 23
    %v223 = vsub.s32 %v222, 127
    %v224 = vand.u32 2147483647, %v106
    %v225 = vand.u32 %v224, 8388607
    %v226 = vor.u32 %v225, 8388608
    %v227 = vsub.s32 0, %v226
    %v228 = vadd.s32 %v223, 1
    %vm229 = vcmp.gt.s32.totalorder %v228, 0
    %v230 = vsel %vm229, %v228, 0
    %v231 = vshrl.u32 %v230, 5
    %v232 = vand.u32 %v230, 31
    %v233 = vsub.s32 32, %v232
    %v234 = vshrl.u32 683565275, %v233
    %v235 = vshll.u32 683565275, %v232
    %v236 = vshrl.u32 2475754826, %v233
    %v237 = vor.u32 %v235, %v236
    %v238 = vshll.u32 2475754826, %v232
    %v239 = vshrl.u32 2131351028, %v233
    %v240 = vor.u32 %v238, %v239
    %v241 = vshll.u32 2131351028, %v232
    %v242 = vshrl.u32 2102212464, %v233
    %v243 = vor.u32 %v241, %v242
    %v244 = vshll.u32 2102212464, %v232
    %v245 = vshrl.u32 920167782, %v233
    %v246 = vor.u32 %v244, %v245
    %v247 = vshll.u32 920167782, %v232
    %v248 = vshrl.u32 1326507024, %v233
    %v249 = vor.u32 %v247, %v248
    %vm250 = vcmp.lt.s32.totalorder %v231, 1
    %vm251 = vcmp.lt.s32.totalorder %v231, 2
    %vm252 = vcmp.lt.s32.totalorder %v231, 3
    %vm253 = vcmp.lt.s32.totalorder %v231, 4
    %v254 = vsel %vm250, %v234, %v237
    %v255 = vsel %vm253, %v243, 2102212464
    %v256 = vsel %vm252, %v240, %v255
    %v257 = vsel %vm251, %v254, %v256
    %v258 = vsel %vm250, %v237, %v240
    %v259 = vsel %vm253, %v246, 920167782
    %v260 = vsel %vm252, %v243, %v259
    %v261 = vsel %vm251, %v258, %v260
    %v262 = vsel %vm250, %v240, %v243
    %v263 = vsel %vm253, %v249, 1326507024
    %v264 = vsel %vm252, %v246, %v263
    %v265 = vsel %vm251, %v262, %v264
    %v266 = vshll.u32 %v226, 8
    %v267 = vmul.u32.u64.compose %v266, %v265
    %v268 = vextract.low.u32 %v267
    %v269 = vextract.high.u32 %v267
    %v270 = vmul.u32.u64.compose %v266, %v261
    %v271 = vextract.low.u32 %v270
    %v272 = vextract.high.u32 %v270
    %v273 = vmul.u32 %v266, %v257
    %v274 = vadd.s32 %v269, %v271
    %vm275 = vc.u32 %v269, %v271
    %v276 = vadd.s32 %v272, 1
    %v277 = vsel %vm275, %v276, %v272
    %v278 = vadd.s32 %v273, %v277
    %v279 = vadd.s32 %v278, 536870912
    %v280 = vshrl.u32 %v279, 30
    %v281 = vshll.u32 %v280, 30
    %v282 = vsub.s32 %v278, %v281
    %vm283 = vcmp.lt.s32.totalorder %v282, 0
    %v284 = vsub.s32 0, %v282
    %v285 = vsel %vm283, %v284, %v282
    %v286 = vclz %v285
    %v287 = vsub.s32 %v286, 2
    %vm288 = vcmp.gt.s32.totalorder 0, %v287
    %v289 = vsel %vm288, 0, %v287
    %v290 = vsub.s32 32, %v289
    %v291 = vshll.u32 %v282, %v289
    %v292 = vshrl.u32 %v274, %v290
    %v293 = vor.u32 %v291, %v292
    %v294 = vsub.s32 4294967266, %v289
    %v295 = vadd.s32 %v294, 127
    %v296 = vshll.u32 %v295, 23
    %v297 = vor.u32 4788187, %v296
    %v298 = vand.u32 2147483647, %v297
    %v300 = vcvt.s32.f32 %v293
    %v301 = vmul.f32 %v300, %v298
    %v302 = vxor.u32 %v301, 2147483648
    %v303 = vsel %vm220, %v302, %v301
    %v304 = vsub.s32 4, %v280
    %v305 = vsel %vm220, %v304, %v280
    %v306 = vsel %vm219, %v106, %v303
    %v307 = vsel %vm219, 0, %v305
    %v308 = vcosq.f32.pop %v306
    %v309 = vsinq.f32.pop %v306
    %vm310 = vweird.f32 %v106
    %v311 = vadd.s32 %v307, 3
    %v312 = vand.u32 %v311, 3
    %vm313 = vcmp.lt.s32.totalorder %v312, 2
    %vm314 = vcmp.eq.s32.totalorder %v312, 0
    %v315 = vxor.u32 %v309, 2147483648
    %v316 = vsel %vm314, %v308, %v315
    %vm317 = vcmp.eq.s32.totalorder %v312, 2
    %v318 = vxor.u32 %v308, 2147483648
    %v319 = vsel %vm317, %v318, %v309
    %v320 = vsel %vm313, %v316, %v319
    %v321 = vsel %vm310, nan, %v320
    %v322 = vand.u32 2147483647, %v111
    %vm323 = vcmp.le.f32.partialorder %v322, 0.7853982
    %vm324 = vcmp.lt.s32.totalorder %v111, 0
    %v325 = vand.u32 %v111, 2139095040
    %v326 = vshrl.u32 %v325, 23
    %v327 = vsub.s32 %v326, 127
    %v328 = vand.u32 2147483647, %v111
    %v329 = vand.u32 %v328, 8388607
    %v330 = vor.u32 %v329, 8388608
    %v331 = vsub.s32 0, %v330
    %v332 = vadd.s32 %v327, 1
    %vm333 = vcmp.gt.s32.totalorder %v332, 0
    %v334 = vsel %vm333, %v332, 0
    %v335 = vshrl.u32 %v334, 5
    %v336 = vand.u32 %v334, 31
    %v337 = vsub.s32 32, %v336
    %v338 = vshrl.u32 683565275, %v337
    %v339 = vshll.u32 683565275, %v336
    %v340 = vshrl.u32 2475754826, %v337
    %v341 = vor.u32 %v339, %v340
    %v342 = vshll.u32 2475754826, %v336
    %v343 = vshrl.u32 2131351028, %v337
    %v344 = vor.u32 %v342, %v343
    %v345 = vshll.u32 2131351028, %v336
    %v346 = vshrl.u32 2102212464, %v337
    %v347 = vor.u32 %v345, %v346
    %v348 = vshll.u32 2102212464, %v336
    %v349 = vshrl.u32 920167782, %v337
    %v350 = vor.u32 %v348, %v349
    %v351 = vshll.u32 920167782, %v336
    %v352 = vshrl.u32 1326507024, %v337
    %v353 = vor.u32 %v351, %v352
    %vm354 = vcmp.lt.s32.totalorder %v335, 1
    %vm355 = vcmp.lt.s32.totalorder %v335, 2
    %vm356 = vcmp.lt.s32.totalorder %v335, 3
    %vm357 = vcmp.lt.s32.totalorder %v335, 4
    %v358 = vsel %vm354, %v338, %v341
    %v359 = vsel %vm357, %v347, 2102212464
    %v360 = vsel %vm356, %v344, %v359
    %v361 = vsel %vm355, %v358, %v360
    %v362 = vsel %vm354, %v341, %v344
    %v363 = vsel %vm357, %v350, 920167782
    %v364 = vsel %vm356, %v347, %v363
    %v365 = vsel %vm355, %v362, %v364
    %v366 = vsel %vm354, %v344, %v347
    %v367 = vsel %vm357, %v353, 1326507024
    %v368 = vsel %vm356, %v350, %v367
    %v369 = vsel %vm355, %v366, %v368
    %v370 = vshll.u32 %v330, 8
    %v371 = vmul.u32.u64.compose %v370, %v369
    %v372 = vextract.low.u32 %v371
    %v373 = vextract.high.u32 %v371
    %v374 = vmul.u32.u64.compose %v370, %v365
    %v375 = vextract.low.u32 %v374
    %v376 = vextract.high.u32 %v374
    %v377 = vmul.u32 %v370, %v361
    %v378 = vadd.s32 %v373, %v375
    %vm379 = vc.u32 %v373, %v375
    %v380 = vadd.s32 %v376, 1
    %v381 = vsel %vm379, %v380, %v376
    %v382 = vadd.s32 %v377, %v381
    %v383 = vadd.s32 %v382, 536870912
    %v384 = vshrl.u32 %v383, 30
    %v385 = vshll.u32 %v384, 30
    %v386 = vsub.s32 %v382, %v385
    %vm387 = vcmp.lt.s32.totalorder %v386, 0
    %v388 = vsub.s32 0, %v386
    %v389 = vsel %vm387, %v388, %v386
    %v390 = vclz %v389
    %v391 = vsub.s32 %v390, 2
    %vm392 = vcmp.gt.s32.totalorder 0, %v391
    %v393 = vsel %vm392, 0, %v391
    %v394 = vsub.s32 32, %v393
    %v395 = vshll.u32 %v386, %v393
    %v396 = vshrl.u32 %v378, %v394
    %v397 = vor.u32 %v395, %v396
    %v398 = vsub.s32 4294967266, %v393
    %v399 = vadd.s32 %v398, 127
    %v400 = vshll.u32 %v399, 23
    %v401 = vor.u32 4788187, %v400
    %v402 = vand.u32 2147483647, %v401
    %v404 = vcvt.s32.f32 %v397
    %v405 = vmul.f32 %v404, %v402
    %v406 = vxor.u32 %v405, 2147483648
    %v407 = vsel %vm324, %v406, %v405
    %v408 = vsub.s32 4, %v384
    %v409 = vsel %vm324, %v408, %v384
    %v410 = vsel %vm323, %v111, %v407
    %v411 = vsel %vm323, 0, %v409
    %v412 = vcosq.f32.pop %v410
    %v413 = vsinq.f32.pop %v410
    %vm414 = vweird.f32 %v111
    %v415 = vadd.s32 %v411, 3
    %v416 = vand.u32 %v415, 3
    %vm417 = vcmp.lt.s32.totalorder %v416, 2
    %vm418 = vcmp.eq.s32.totalorder %v416, 0
    %v419 = vxor.u32 %v413, 2147483648
    %v420 = vsel %vm418, %v412, %v419
    %vm421 = vcmp.eq.s32.totalorder %v416, 2
    %v422 = vxor.u32 %v412, 2147483648
    %v423 = vsel %vm421, %v422, %v413
    %v424 = vsel %vm417, %v420, %v423
    %v425 = vsel %vm414, nan, %v424
    %v426 = vand.u32 2147483647, %v101
    %vm427 = vcmp.le.f32.partialorder %v426, 0.7853982
    %vm428 = vcmp.lt.s32.totalorder %v101, 0
    %v429 = vand.u32 %v101, 2139095040
    %v430 = vshrl.u32 %v429, 23
    %v431 = vsub.s32 %v430, 127
    %v432 = vand.u32 2147483647, %v101
    %v433 = vand.u32 %v432, 8388607
    %v434 = vor.u32 %v433, 8388608
    %v435 = vsub.s32 0, %v434
    %v436 = vadd.s32 %v431, 1
    %vm437 = vcmp.gt.s32.totalorder %v436, 0
    %v438 = vsel %vm437, %v436, 0
    %v439 = vshrl.u32 %v438, 5
    %v440 = vand.u32 %v438, 31
    %v441 = vsub.s32 32, %v440
    %v442 = vshrl.u32 683565275, %v441
    %v443 = vshll.u32 683565275, %v440
    %v444 = vshrl.u32 2475754826, %v441
    %v445 = vor.u32 %v443, %v444
    %v446 = vshll.u32 2475754826, %v440
    %v447 = vshrl.u32 2131351028, %v441
    %v448 = vor.u32 %v446, %v447
    %v449 = vshll.u32 2131351028, %v440
    %v450 = vshrl.u32 2102212464, %v441
    %v451 = vor.u32 %v449, %v450
    %v452 = vshll.u32 2102212464, %v440
    %v453 = vshrl.u32 920167782, %v441
    %v454 = vor.u32 %v452, %v453
    %v455 = vshll.u32 920167782, %v440
    %v456 = vshrl.u32 1326507024, %v441
    %v457 = vor.u32 %v455, %v456
    %vm458 = vcmp.lt.s32.totalorder %v439, 1
    %vm459 = vcmp.lt.s32.totalorder %v439, 2
    %vm460 = vcmp.lt.s32.totalorder %v439, 3
    %vm461 = vcmp.lt.s32.totalorder %v439, 4
    %v462 = vsel %vm458, %v442, %v445
    %v463 = vsel %vm461, %v451, 2102212464
    %v464 = vsel %vm460, %v448, %v463
    %v465 = vsel %vm459, %v462, %v464
    %v466 = vsel %vm458, %v445, %v448
    %v467 = vsel %vm461, %v454, 920167782
    %v468 = vsel %vm460, %v451, %v467
    %v469 = vsel %vm459, %v466, %v468
    %v470 = vsel %vm458, %v448, %v451
    %v471 = vsel %vm461, %v457, 1326507024
    %v472 = vsel %vm460, %v454, %v471
    %v473 = vsel %vm459, %v470, %v472
    %v474 = vshll.u32 %v434, 8
    %v475 = vmul.u32.u64.compose %v474, %v473
    %v476 = vextract.low.u32 %v475
    %v477 = vextract.high.u32 %v475
    %v478 = vmul.u32.u64.compose %v474, %v469
    %v479 = vextract.low.u32 %v478
    %v480 = vextract.high.u32 %v478
    %v481 = vmul.u32 %v474, %v465
    %v482 = vadd.s32 %v477, %v479
    %vm483 = vc.u32 %v477, %v479
    %v484 = vadd.s32 %v480, 1
    %v485 = vsel %vm483, %v484, %v480
    %v486 = vadd.s32 %v481, %v485
    %v487 = vadd.s32 %v486, 536870912
    %v488 = vshrl.u32 %v487, 30
    %v489 = vshll.u32 %v488, 30
    %v490 = vsub.s32 %v486, %v489
    %vm491 = vcmp.lt.s32.totalorder %v490, 0
    %v492 = vsub.s32 0, %v490
    %v493 = vsel %vm491, %v492, %v490
    %v494 = vclz %v493
    %v495 = vsub.s32 %v494, 2
    %vm496 = vcmp.gt.s32.totalorder 0, %v495
    %v497 = vsel %vm496, 0, %v495
    %v498 = vsub.s32 32, %v497
    %v499 = vshll.u32 %v490, %v497
    %v500 = vshrl.u32 %v482, %v498
    %v501 = vor.u32 %v499, %v500
    %v502 = vsub.s32 4294967266, %v497
    %v503 = vadd.s32 %v502, 127
    %v504 = vshll.u32 %v503, 23
    %v505 = vor.u32 4788187, %v504
    %v506 = vand.u32 2147483647, %v505
    %v508 = vcvt.s32.f32 %v501
    %v509 = vmul.f32 %v508, %v506
    %v510 = vxor.u32 %v509, 2147483648
    %v511 = vsel %vm428, %v510, %v509
    %v512 = vsub.s32 4, %v488
    %v513 = vsel %vm428, %v512, %v488
    %v514 = vsel %vm427, %v101, %v511
    %v515 = vsel %vm427, 0, %v513
    %v516 = vcosq.f32.pop %v514
    %v517 = vsinq.f32.pop %v514
    %vm518 = vweird.f32 %v101
    %v519 = vand.u32 %v515, 3
    %vm520 = vcmp.lt.s32.totalorder %v519, 2
    %vm521 = vcmp.eq.s32.totalorder %v519, 0
    %v522 = vxor.u32 %v517, 2147483648
    %v523 = vsel %vm521, %v516, %v522
    %vm524 = vcmp.eq.s32.totalorder %v519, 2
    %v525 = vxor.u32 %v516, 2147483648
    %v526 = vsel %vm524, %v525, %v517
    %v527 = vsel %vm520, %v523, %v526
    %v528 = vsel %vm518, nan, %v527
    %v529 = vand.u32 2147483647, %v106
    %vm530 = vcmp.le.f32.partialorder %v529, 0.7853982
    %vm531 = vcmp.lt.s32.totalorder %v106, 0
    %v532 = vand.u32 %v106, 2139095040
    %v533 = vshrl.u32 %v532, 23
    %v534 = vsub.s32 %v533, 127
    %v535 = vand.u32 2147483647, %v106
    %v536 = vand.u32 %v535, 8388607
    %v537 = vor.u32 %v536, 8388608
    %v538 = vsub.s32 0, %v537
    %v539 = vadd.s32 %v534, 1
    %vm540 = vcmp.gt.s32.totalorder %v539, 0
    %v541 = vsel %vm540, %v539, 0
    %v542 = vshrl.u32 %v541, 5
    %v543 = vand.u32 %v541, 31
    %v544 = vsub.s32 32, %v543
    %v545 = vshrl.u32 683565275, %v544
    %v546 = vshll.u32 683565275, %v543
    %v547 = vshrl.u32 2475754826, %v544
    %v548 = vor.u32 %v546, %v547
    %v549 = vshll.u32 2475754826, %v543
    %v550 = vshrl.u32 2131351028, %v544
    %v551 = vor.u32 %v549, %v550
    %v552 = vshll.u32 2131351028, %v543
    %v553 = vshrl.u32 2102212464, %v544
    %v554 = vor.u32 %v552, %v553
    %v555 = vshll.u32 2102212464, %v543
    %v556 = vshrl.u32 920167782, %v544
    %v557 = vor.u32 %v555, %v556
    %v558 = vshll.u32 920167782, %v543
    %v559 = vshrl.u32 1326507024, %v544
    %v560 = vor.u32 %v558, %v559
    %vm561 = vcmp.lt.s32.totalorder %v542, 1
    %vm562 = vcmp.lt.s32.totalorder %v542, 2
    %vm563 = vcmp.lt.s32.totalorder %v542, 3
    %vm564 = vcmp.lt.s32.totalorder %v542, 4
    %v565 = vsel %vm561, %v545, %v548
    %v566 = vsel %vm564, %v554, 2102212464
    %v567 = vsel %vm563, %v551, %v566
    %v568 = vsel %vm562, %v565, %v567
    %v569 = vsel %vm561, %v548, %v551
    %v570 = vsel %vm564, %v557, 920167782
    %v571 = vsel %vm563, %v554, %v570
    %v572 = vsel %vm562, %v569, %v571
    %v573 = vsel %vm561, %v551, %v554
    %v574 = vsel %vm564, %v560, 1326507024
    %v575 = vsel %vm563, %v557, %v574
    %v576 = vsel %vm562, %v573, %v575
    %v577 = vshll.u32 %v537, 8
    %v578 = vmul.u32.u64.compose %v577, %v576
    %v579 = vextract.low.u32 %v578
    %v580 = vextract.high.u32 %v578
    %v581 = vmul.u32.u64.compose %v577, %v572
    %v582 = vextract.low.u32 %v581
    %v583 = vextract.high.u32 %v581
    %v584 = vmul.u32 %v577, %v568
    %v585 = vadd.s32 %v580, %v582
    %vm586 = vc.u32 %v580, %v582
    %v587 = vadd.s32 %v583, 1
    %v588 = vsel %vm586, %v587, %v583
    %v589 = vadd.s32 %v584, %v588
    %v590 = vadd.s32 %v589, 536870912
    %v591 = vshrl.u32 %v590, 30
    %v592 = vshll.u32 %v591, 30
    %v593 = vsub.s32 %v589, %v592
    %vm594 = vcmp.lt.s32.totalorder %v593, 0
    %v595 = vsub.s32 0, %v593
    %v596 = vsel %vm594, %v595, %v593
    %v597 = vclz %v596
    %v598 = vsub.s32 %v597, 2
    %vm599 = vcmp.gt.s32.totalorder 0, %v598
    %v600 = vsel %vm599, 0, %v598
    %v601 = vsub.s32 32, %v600
    %v602 = vshll.u32 %v593, %v600
    %v603 = vshrl.u32 %v585, %v601
    %v604 = vor.u32 %v602, %v603
    %v605 = vsub.s32 4294967266, %v600
    %v606 = vadd.s32 %v605, 127
    %v607 = vshll.u32 %v606, 23
    %v608 = vor.u32 4788187, %v607
    %v609 = vand.u32 2147483647, %v608
    %v611 = vcvt.s32.f32 %v604
    %v612 = vmul.f32 %v611, %v609
    %v613 = vxor.u32 %v612, 2147483648
    %v614 = vsel %vm531, %v613, %v612
    %v615 = vsub.s32 4, %v591
    %v616 = vsel %vm531, %v615, %v591
    %v617 = vsel %vm530, %v106, %v614
    %v618 = vsel %vm530, 0, %v616
    %v619 = vcosq.f32.pop %v617
    %v620 = vsinq.f32.pop %v617
    %vm621 = vweird.f32 %v106
    %v622 = vand.u32 %v618, 3
    %vm623 = vcmp.lt.s32.totalorder %v622, 2
    %vm624 = vcmp.eq.s32.totalorder %v622, 0
    %v625 = vxor.u32 %v620, 2147483648
    %v626 = vsel %vm624, %v619, %v625
    %vm627 = vcmp.eq.s32.totalorder %v622, 2
    %v628 = vxor.u32 %v619, 2147483648
    %v629 = vsel %vm627, %v628, %v620
    %v630 = vsel %vm623, %v626, %v629
    %v631 = vsel %vm621, nan, %v630
    %v632 = vand.u32 2147483647, %v111
    %vm633 = vcmp.le.f32.partialorder %v632, 0.7853982
    %vm634 = vcmp.lt.s32.totalorder %v111, 0
    %v635 = vand.u32 %v111, 2139095040
    %v636 = vshrl.u32 %v635, 23
    %v637 = vsub.s32 %v636, 127
    %v638 = vand.u32 2147483647, %v111
    %v639 = vand.u32 %v638, 8388607
    %v640 = vor.u32 %v639, 8388608
    %v641 = vsub.s32 0, %v640
    %v642 = vadd.s32 %v637, 1
    %vm643 = vcmp.gt.s32.totalorder %v642, 0
    %v644 = vsel %vm643, %v642, 0
    %v645 = vshrl.u32 %v644, 5
    %v646 = vand.u32 %v644, 31
    %v647 = vsub.s32 32, %v646
    %v648 = vshrl.u32 683565275, %v647
    %v649 = vshll.u32 683565275, %v646
    %v650 = vshrl.u32 2475754826, %v647
    %v651 = vor.u32 %v649, %v650
    %v652 = vshll.u32 2475754826, %v646
    %v653 = vshrl.u32 2131351028, %v647
    %v654 = vor.u32 %v652, %v653
    %v655 = vshll.u32 2131351028, %v646
    %v656 = vshrl.u32 2102212464, %v647
    %v657 = vor.u32 %v655, %v656
    %v658 = vshll.u32 2102212464, %v646
    %v659 = vshrl.u32 920167782, %v647
    %v660 = vor.u32 %v658, %v659
    %v661 = vshll.u32 920167782, %v646
    %v662 = vshrl.u32 1326507024, %v647
    %v663 = vor.u32 %v661, %v662
    %vm664 = vcmp.lt.s32.totalorder %v645, 1
    %vm665 = vcmp.lt.s32.totalorder %v645, 2
    %vm666 = vcmp.lt.s32.totalorder %v645, 3
    %vm667 = vcmp.lt.s32.totalorder %v645, 4
    %v668 = vsel %vm664, %v648, %v651
    %v669 = vsel %vm667, %v657, 2102212464
    %v670 = vsel %vm666, %v654, %v669
    %v671 = vsel %vm665, %v668, %v670
    %v672 = vsel %vm664, %v651, %v654
    %v673 = vsel %vm667, %v660, 920167782
    %v674 = vsel %vm666, %v657, %v673
    %v675 = vsel %vm665, %v672, %v674
    %v676 = vsel %vm664, %v654, %v657
    %v677 = vsel %vm667, %v663, 1326507024
    %v678 = vsel %vm666, %v660, %v677
    %v679 = vsel %vm665, %v676, %v678
    %v680 = vshll.u32 %v640, 8
    %v681 = vmul.u32.u64.compose %v680, %v679
    %v682 = vextract.low.u32 %v681
    %v683 = vextract.high.u32 %v681
    %v684 = vmul.u32.u64.compose %v680, %v675
    %v685 = vextract.low.u32 %v684
    %v686 = vextract.high.u32 %v684
    %v687 = vmul.u32 %v680, %v671
    %v688 = vadd.s32 %v683, %v685
    %vm689 = vc.u32 %v683, %v685
    %v690 = vadd.s32 %v686, 1
    %v691 = vsel %vm689, %v690, %v686
    %v692 = vadd.s32 %v687, %v691
    %v693 = vadd.s32 %v692, 536870912
    %v694 = vshrl.u32 %v693, 30
    %v695 = vshll.u32 %v694, 30
    %v696 = vsub.s32 %v692, %v695
    %vm697 = vcmp.lt.s32.totalorder %v696, 0
    %v698 = vsub.s32 0, %v696
    %v699 = vsel %vm697, %v698, %v696
    %v700 = vclz %v699
    %v701 = vsub.s32 %v700, 2
    %vm702 = vcmp.gt.s32.totalorder 0, %v701
    %v703 = vsel %vm702, 0, %v701
    %v704 = vsub.s32 32, %v703
    %v705 = vshll.u32 %v696, %v703
    %v706 = vshrl.u32 %v688, %v704
    %v707 = vor.u32 %v705, %v706
    %v708 = vsub.s32 4294967266, %v703
    %v709 = vadd.s32 %v708, 127
    %v710 = vshll.u32 %v709, 23
    %v711 = vor.u32 4788187, %v710
    %v712 = vand.u32 2147483647, %v711
    %v714 = vcvt.s32.f32 %v707
    %v715 = vmul.f32 %v714, %v712
    %v716 = vxor.u32 %v715, 2147483648
    %v717 = vsel %vm634, %v716, %v715
    %v718 = vsub.s32 4, %v694
    %v719 = vsel %vm634, %v718, %v694
    %v720 = vsel %vm633, %v111, %v717
    %v721 = vsel %vm633, 0, %v719
    %v722 = vcosq.f32.pop %v720
    %v723 = vsinq.f32.pop %v720
    %vm724 = vweird.f32 %v111
    %v725 = vand.u32 %v721, 3
    %vm726 = vcmp.lt.s32.totalorder %v725, 2
    %vm727 = vcmp.eq.s32.totalorder %v725, 0
    %v728 = vxor.u32 %v723, 2147483648
    %v729 = vsel %vm727, %v722, %v728
    %vm730 = vcmp.eq.s32.totalorder %v725, 2
    %v731 = vxor.u32 %v722, 2147483648
    %v732 = vsel %vm730, %v731, %v723
    %v733 = vsel %vm726, %v729, %v732
    %v734 = vsel %vm724, nan, %v733
    %v735 = vld [vmem:[%s2 + $0x28] sm:$0xff]
    %v736 = vld [vmem:[%s2 + $0x30] sm:$0xff]
    %v737 = vld [vmem:[%s2 + $0x38] sm:$0xff]
    %v738 = vld [vmem:[%s2 + $0x40] sm:$0xff]
    %v739 = vld [vmem:[%s2 + $0x48] sm:$0xff]
    %v740 = vld [vmem:[%s2 + $0x50] sm:$0xff]
    %v741 = vld [vmem:[%s2 + $0x58] sm:$0xff]
    %v742 = vld [vmem:[%s2 + $0x60] sm:$0xff]
    %vm743 = vcmask 146432
    %v745 = vsel %vm743, %v739, 0
    %v748 = vsel %vm743, %v740, 0
    %v751 = vsel %vm743, %v741, 0
    %v754 = vsel %vm743, %v742, 0
    %vm756 = vcmask 1041408
    %v758 = vsel %vm756, %v734, 0
    %760 = vmatprep.subr.mxu0 0.0
    %761 = vmatpush1.msra.mxu0 %v528
    %762 = vmatprep.subr.mxu0 0.0
    %763 = vmatpush1.msra.mxu0 %v631
    %764 = vmatprep.subr.mxu0 0.0
    %765 = vmatpush1.msra.mxu0 %v758
    %766 = vmatprep.subr.mxu0 0.0
    %767 = vmatpush1.msra.mxu0 0.0
    %768 = vmatprep.subr.mxu0 0.0
    %769 = vmatpush1.msra.mxu0 0.0
    %770 = vmatprep.subr.mxu0 0.0
    %771 = vmatpush1.msra.mxu0 0.0
    %772 = vmatprep.subr.mxu0 0.0
    %773 = vmatpush1.msra.mxu0 0.0
    %774 = vmatprep.subr.mxu0 0.0
    %775 = vmatpush1.msra.mxu0 0.0
    %776 = vmatprep.subr.mxu0 0.0
    %777 = vmatpush1.msra.mxu0 0.0
    %778 = vmatprep.subr.mxu0 0.0
    %779 = vmatpush1.msra.mxu0 0.0
    %780 = vmatprep.subr.mxu0 0.0
    %781 = vmatpush1.msra.mxu0 0.0
    %782 = vmatprep.subr.mxu0 0.0
    %783 = vmatpush1.msra.mxu0 0.0
    %784 = vmatprep.subr.mxu0 0.0
    %785 = vmatpush1.msra.mxu0 0.0
    %786 = vmatprep.subr.mxu0 0.0
    %787 = vmatpush1.msra.mxu0 0.0
    %788 = vmatprep.subr.mxu0 0.0
    %789 = vmatpush1.msra.mxu0 0.0
    %790 = vmatprep.subr.mxu0 0.0
    %791 = vmatpush1.msra.mxu0 0.0
    %792 = vmatprep.subr.mxu0 0.0
    %793 = vmatpush1.msra.mxu0 0.0
    %794 = vmatprep.subr.mxu0 0.0
    %795 = vmatpush1.msra.mxu0 0.0
    %796 = vmatprep.subr.mxu0 0.0
    %797 = vmatpush1.msra.mxu0 0.0
    %798 = vmatprep.subr.mxu0 0.0
    %799 = vmatpush1.msra.mxu0 0.0
    %800 = vmatprep.subr.mxu0 0.0
    %801 = vmatpush1.msra.mxu0 0.0
    %802 = vmatprep.subr.mxu0 0.0
    %803 = vmatpush1.msra.mxu0 0.0
    %804 = vmatprep.subr.mxu0 0.0
    %805 = vmatpush1.msra.mxu0 0.0
    %806 = vmatprep.subr.mxu0 0.0
    %807 = vmatpush1.msra.mxu0 0.0
    %808 = vmatprep.subr.mxu0 0.0
    %809 = vmatpush1.msra.mxu0 0.0
    %810 = vmatprep.subr.mxu0 0.0
    %811 = vmatpush1.msra.mxu0 0.0
    %812 = vmatprep.subr.mxu0 0.0
    %813 = vmatpush1.msra.mxu0 0.0
    %814 = vmatprep.subr.mxu0 0.0
    %815 = vmatpush1.msra.mxu0 0.0
    %816 = vmatprep.subr.mxu0 0.0
    %817 = vmatpush1.msra.mxu0 0.0
    %818 = vmatprep.subr.mxu0 0.0
    %819 = vmatpush1.msra.mxu0 0.0
    %820 = vmatprep.subr.mxu0 0.0
    %821 = vmatpush1.msra.mxu0 0.0
    %822 = vmatprep.subr.mxu0 0.0
    %823 = vmatpush1.msra.mxu0 0.0
    %824 = vmatprep.mubr.f32.mxu0 0.0
    %825 = vmatmul.mubr.f32.gmra.mrb[0].mxu0 %v745
    %v826 = vpop.f32.mrb[0].mxu0
    %v827 = vadd.f32 0.0, %v826
    %v828 = vpop.f32.mrb[0].mxu0
    %829 = vmatprep.mubr.f32.mxu0 0.0
    %830 = vmatmul.mubr.f32.gmra.mrb[0].mxu0 %v748
    %v831 = vpop.f32.mrb[0].mxu0
    %v832 = vadd.f32 0.0, %v831
    %v833 = vpop.f32.mrb[0].mxu0
    %834 = vmatprep.mubr.f32.mxu0 0.0
    %835 = vmatmul.mubr.f32.gmra.mrb[0].mxu0 %v751
    %v836 = vpop.f32.mrb[0].mxu0
    %v837 = vadd.f32 0.0, %v836
    %v838 = vpop.f32.mrb[0].mxu0
    %839 = vmatprep.mubr.f32.mxu0 0.0
    %840 = vmatmul.mubr.f32.gmra.mrb[0].mxu0 %v754
    %v841 = vpop.f32.mrb[0].mxu0
    %v842 = vadd.f32 0.0, %v841
    %v843 = vpop.f32.mrb[0].mxu0
    %844 = vdwg.mxu0
    %v846 = vsel %vm743, %v735, 0
    %v849 = vsel %vm743, %v736, 0
    %v852 = vsel %vm743, %v737, 0
    %v855 = vsel %vm743, %v738, 0
    %v858 = vsel %vm756, %v425, 0
    %860 = vmatprep.subr.mxu0 0.0
    %861 = vmatpush1.msra.mxu0 %v217
    %862 = vmatprep.subr.mxu0 0.0
    %863 = vmatpush1.msra.mxu0 %v321
    %864 = vmatprep.subr.mxu0 0.0
    %865 = vmatpush1.msra.mxu0 %v858
    %866 = vmatprep.subr.mxu0 0.0
    %867 = vmatpush1.msra.mxu0 0.0
    %868 = vmatprep.subr.mxu0 0.0
    %869 = vmatpush1.msra.mxu0 0.0
    %870 = vmatprep.subr.mxu0 0.0
    %871 = vmatpush1.msra.mxu0 0.0
    %872 = vmatprep.subr.mxu0 0.0
    %873 = vmatpush1.msra.mxu0 0.0
    %874 = vmatprep.subr.mxu0 0.0
    %875 = vmatpush1.msra.mxu0 0.0
    %876 = vmatprep.subr.mxu0 0.0
    %877 = vmatpush1.msra.mxu0 0.0
    %878 = vmatprep.subr.mxu0 0.0
    %879 = vmatpush1.msra.mxu0 0.0
    %880 = vmatprep.subr.mxu0 0.0
    %881 = vmatpush1.msra.mxu0 0.0
    %882 = vmatprep.subr.mxu0 0.0
    %883 = vmatpush1.msra.mxu0 0.0
    %884 = vmatprep.subr.mxu0 0.0
    %885 = vmatpush1.msra.mxu0 0.0
    %886 = vmatprep.subr.mxu0 0.0
    %887 = vmatpush1.msra.mxu0 0.0
    %888 = vmatprep.subr.mxu0 0.0
    %889 = vmatpush1.msra.mxu0 0.0
    %890 = vmatprep.subr.mxu0 0.0
    %891 = vmatpush1.msra.mxu0 0.0
    %892 = vmatprep.subr.mxu0 0.0
    %893 = vmatpush1.msra.mxu0 0.0
    %894 = vmatprep.subr.mxu0 0.0
    %895 = vmatpush1.msra.mxu0 0.0
    %896 = vmatprep.subr.mxu0 0.0
    %897 = vmatpush1.msra.mxu0 0.0
    %898 = vmatprep.subr.mxu0 0.0
    %899 = vmatpush1.msra.mxu0 0.0
    %900 = vmatprep.subr.mxu0 0.0
    %901 = vmatpush1.msra.mxu0 0.0
    %902 = vmatprep.subr.mxu0 0.0
    %903 = vmatpush1.msra.mxu0 0.0
    %904 = vmatprep.subr.mxu0 0.0
    %905 = vmatpush1.msra.mxu0 0.0
    %906 = vmatprep.subr.mxu0 0.0
    %907 = vmatpush1.msra.mxu0 0.0
    %908 = vmatprep.subr.mxu0 0.0
    %909 = vmatpush1.msra.mxu0 0.0
    %910 = vmatprep.subr.mxu0 0.0
    %911 = vmatpush1.msra.mxu0 0.0
    %912 = vmatprep.subr.mxu0 0.0
    %913 = vmatpush1.msra.mxu0 0.0
    %914 = vmatprep.subr.mxu0 0.0
    %915 = vmatpush1.msra.mxu0 0.0
    %916 = vmatprep.subr.mxu0 0.0
    %917 = vmatpush1.msra.mxu0 0.0
    %918 = vmatprep.subr.mxu0 0.0
    %919 = vmatpush1.msra.mxu0 0.0
    %920 = vmatprep.subr.mxu0 0.0
    %921 = vmatpush1.msra.mxu0 0.0
    %922 = vmatprep.subr.mxu0 0.0
    %923 = vmatpush1.msra.mxu0 0.0
    %924 = vmatprep.mubr.f32.mxu0 0.0
    %925 = vmatmul.mubr.f32.gmra.mrb[0].mxu0 %v846
    %v926 = vpop.f32.mrb[0].mxu0
    %v927 = vadd.f32 %v827, %v926
    %v928 = vpop.f32.mrb[0].mxu0
    %929 = vmatprep.mubr.f32.mxu0 0.0
    %930 = vmatmul.mubr.f32.gmra.mrb[0].mxu0 %v849
    %v931 = vpop.f32.mrb[0].mxu0
    %v932 = vadd.f32 %v832, %v931
    %v933 = vpop.f32.mrb[0].mxu0
    %934 = vmatprep.mubr.f32.mxu0 0.0
    %935 = vmatmul.mubr.f32.gmra.mrb[0].mxu0 %v852
    %v936 = vpop.f32.mrb[0].mxu0
    %v937 = vadd.f32 %v837, %v936
    %v938 = vpop.f32.mrb[0].mxu0
    %939 = vmatprep.mubr.f32.mxu0 0.0
    %940 = vmatmul.mubr.f32.gmra.mrb[0].mxu0 %v855
    %v941 = vpop.f32.mrb[0].mxu0
    %v942 = vadd.f32 %v842, %v941
    %v943 = vpop.f32.mrb[0].mxu0
    %944 = vdwg.mxu0
    %v945 = vld [vmem:[%s2 + $0x68] sm:$0xff]
    %v946 = vld [vmem:[%s2 + $0x70] sm:$0xff]
    %v947 = vld [vmem:[%s2 + $0x78] sm:$0xff]
    %v948 = vld [vmem:[%s2 + $0x80] sm:$0xff]
    %v950 = vsel %vm20, %v945, 0
    %v953 = vsel %vm20, %v946, 0
    %v956 = vsel %vm20, %v947, 0
    %v959 = vsel %vm20, %v948, 0
    %961 = vmatprep.subr.mxu0 0.0
    %962 = vmatpush1.msra.mxu0 %v32
    %963 = vmatprep.subr.mxu0 0.0
    %964 = vmatpush1.msra.mxu0 0.0
    %965 = vmatprep.subr.mxu0 0.0
    %966 = vmatpush1.msra.mxu0 0.0
    %967 = vmatprep.subr.mxu0 0.0
    %968 = vmatpush1.msra.mxu0 0.0
    %969 = vmatprep.subr.mxu0 0.0
    %970 = vmatpush1.msra.mxu0 0.0
    %971 = vmatprep.subr.mxu0 0.0
    %972 = vmatpush1.msra.mxu0 0.0
    %973 = vmatprep.subr.mxu0 0.0
    %974 = vmatpush1.msra.mxu0 0.0
    %975 = vmatprep.subr.mxu0 0.0
    %976 = vmatpush1.msra.mxu0 0.0
    %977 = vmatprep.subr.mxu0 0.0
    %978 = vmatpush1.msra.mxu0 0.0
    %979 = vmatprep.subr.mxu0 0.0
    %980 = vmatpush1.msra.mxu0 0.0
    %981 = vmatprep.subr.mxu0 0.0
    %982 = vmatpush1.msra.mxu0 0.0
    %983 = vmatprep.subr.mxu0 0.0
    %984 = vmatpush1.msra.mxu0 0.0
    %985 = vmatprep.subr.mxu0 0.0
    %986 = vmatpush1.msra.mxu0 0.0
    %987 = vmatprep.subr.mxu0 0.0
    %988 = vmatpush1.msra.mxu0 0.0
    %989 = vmatprep.subr.mxu0 0.0
    %990 = vmatpush1.msra.mxu0 0.0
    %991 = vmatprep.subr.mxu0 0.0
    %992 = vmatpush1.msra.mxu0 0.0
    %993 = vmatprep.subr.mxu0 0.0
    %994 = vmatpush1.msra.mxu0 0.0
    %995 = vmatprep.subr.mxu0 0.0
    %996 = vmatpush1.msra.mxu0 0.0
    %997 = vmatprep.subr.mxu0 0.0
    %998 = vmatpush1.msra.mxu0 0.0
    %999 = vmatprep.subr.mxu0 0.0
    %1000 = vmatpush1.msra.mxu0 0.0
    %1001 = vmatprep.subr.mxu0 0.0
    %1002 = vmatpush1.msra.mxu0 0.0
    %1003 = vmatprep.subr.mxu0 0.0
    %1004 = vmatpush1.msra.mxu0 0.0
    %1005 = vmatprep.subr.mxu0 0.0
    %1006 = vmatpush1.msra.mxu0 0.0
    %1007 = vmatprep.subr.mxu0 0.0
    %1008 = vmatpush1.msra.mxu0 0.0
    %1009 = vmatprep.subr.mxu0 0.0
    %1010 = vmatpush1.msra.mxu0 0.0
    %1011 = vmatprep.subr.mxu0 0.0
    %1012 = vmatpush1.msra.mxu0 0.0
    %1013 = vmatprep.subr.mxu0 0.0
    %1014 = vmatpush1.msra.mxu0 0.0
    %1015 = vmatprep.subr.mxu0 0.0
    %1016 = vmatpush1.msra.mxu0 0.0
    %1017 = vmatprep.subr.mxu0 0.0
    %1018 = vmatpush1.msra.mxu0 0.0
    %1019 = vmatprep.subr.mxu0 0.0
    %1020 = vmatpush1.msra.mxu0 0.0
    %1021 = vmatprep.subr.mxu0 0.0
    %1022 = vmatpush1.msra.mxu0 0.0
    %1023 = vmatprep.subr.mxu0 0.0
    %1024 = vmatpush1.msra.mxu0 0.0
    %1025 = vmatprep.mubr.f32.mxu0 0.0
    %1026 = vmatmul.mubr.f32.gmra.mrb[0].mxu0 %v950
    %v1027 = vpop.f32.mrb[0].mxu0
    %v1028 = vadd.f32 0.0, %v1027
    %v1029 = vpop.f32.mrb[0].mxu0
    %1030 = vmatprep.mubr.f32.mxu0 0.0
    %1031 = vmatmul.mubr.f32.gmra.mrb[0].mxu0 %v953
    %v1032 = vpop.f32.mrb[0].mxu0
    %v1033 = vadd.f32 0.0, %v1032
    %v1034 = vpop.f32.mrb[0].mxu0
    %1035 = vmatprep.mubr.f32.mxu0 0.0
    %1036 = vmatmul.mubr.f32.gmra.mrb[0].mxu0 %v956
    %v1037 = vpop.f32.mrb[0].mxu0
    %v1038 = vadd.f32 0.0, %v1037
    %v1039 = vpop.f32.mrb[0].mxu0
    %1040 = vmatprep.mubr.f32.mxu0 0.0
    %1041 = vmatmul.mubr.f32.gmra.mrb[0].mxu0 %v959
    %v1042 = vpop.f32.mrb[0].mxu0
    %v1043 = vadd.f32 0.0, %v1042
    %v1044 = vpop.f32.mrb[0].mxu0
    %1045 = vdwg.mxu0
    %v1046 = vadd.f32 %v927, %v1028
    %v1047 = vadd.f32 %v932, %v1033
    %v1048 = vadd.f32 %v937, %v1038
    %v1049 = vadd.f32 %v942, %v1043
    %v1050 = vld [vmem:[%s2 + $0x88] sm:$0xff]
    %v1051 = vld [vmem:[%s2 + $0x90] sm:$0xff]
    %v1052 = vld [vmem:[%s2 + $0x98] sm:$0xff]
    %v1053 = vld [vmem:[%s2 + $0xa0] sm:$0xff]
    %1055 = vset.pattern.permute.xlu0 0
    %1056 = vperm.xlu0 %1055, %v1050
    %v1057 = vpop.permute.xlu0 %1056
    %1060 = vset.pattern.permute.xlu0 0
    %1061 = vperm.xlu0 %1060, %v1051
    %v1062 = vpop.permute.xlu0 %1061
    %1065 = vset.pattern.permute.xlu0 0
    %1066 = vperm.xlu0 %1065, %v1052
    %v1067 = vpop.permute.xlu0 %1066
    %1070 = vset.pattern.permute.xlu0 0
    %1071 = vperm.xlu0 %1070, %v1053
    %v1072 = vpop.permute.xlu0 %1071
    %v1074 = vadd.f32 %v1046, %v1057
    %v1075 = vadd.f32 %v1047, %v1062
    %v1076 = vadd.f32 %v1048, %v1067
    %v1077 = vadd.f32 %v1049, %v1072
    %v1078 = vmax.f32 %v1074, 0.0
    %v1079 = vmax.f32 %v1075, 0.0
    %v1080 = vmax.f32 %v1076, 0.0
    %v1081 = vmax.f32 %v1077, 0.0
    %v1082 = vld [vmem:[%s2 + $0xa8] sm:$0xff]
    %v1083 = vld [vmem:[%s2 + $0xb0] sm:$0xff]
    %v1084 = vld [vmem:[%s2 + $0xb8] sm:$0xff]
    %v1085 = vld [vmem:[%s2 + $0xc0] sm:$0xff]
    %v1086 = vld [vmem:[%s2 + $0xc8] sm:$0xff]
    %v1087 = vld [vmem:[%s2 + $0xd0] sm:$0xff]
    %v1088 = vld [vmem:[%s2 + $0xd8] sm:$0xff]
    %v1089 = vld [vmem:[%s2 + $0xe0] sm:$0xff]
    %1091 = vset.pattern.permute.xlu0 0
    %1092 = vperm.xlu0 %1091, %v1086
    %v1093 = vpop.permute.xlu0 %1092
    %1096 = vset.pattern.permute.xlu0 0
    %1097 = vperm.xlu0 %1096, %v1087
    %v1098 = vpop.permute.xlu0 %1097
    %1101 = vset.pattern.permute.xlu0 0
    %1102 = vperm.xlu0 %1101, %v1088
    %v1103 = vpop.permute.xlu0 %1102
    %1106 = vset.pattern.permute.xlu0 0
    %1107 = vperm.xlu0 %1106, %v1089
    %v1108 = vpop.permute.xlu0 %1107
    %vm1110 = vcmask 261120
    %v1112 = vsel %vm1110, %v1082, 0
    %v1115 = vsel %vm1110, %v1083, 0
    %v1118 = vsel %vm1110, %v1084, 0
    %v1121 = vsel %vm1110, %v1085, 0
    %1123 = vmatprep.subr.mxu0 0.0
    %1124 = vmatpush1.msra.mxu0 %v1078
    %1125 = vmatprep.subr.mxu0 0.0
    %1126 = vmatpush1.msra.mxu0 %v1079
    %1127 = vmatprep.subr.mxu0 0.0
    %1128 = vmatpush1.msra.mxu0 %v1080
    %1129 = vmatprep.subr.mxu0 0.0
    %1130 = vmatpush1.msra.mxu0 %v1081
    %1131 = vmatprep.subr.mxu0 0.0
    %1132 = vmatpush1.msra.mxu0 0.0
    %1133 = vmatprep.subr.mxu0 0.0
    %1134 = vmatpush1.msra.mxu0 0.0
    %1135 = vmatprep.subr.mxu0 0.0
    %1136 = vmatpush1.msra.mxu0 0.0
    %1137 = vmatprep.subr.mxu0 0.0
    %1138 = vmatpush1.msra.mxu0 0.0
    %1139 = vmatprep.subr.mxu0 0.0
    %1140 = vmatpush1.msra.mxu0 0.0
    %1141 = vmatprep.subr.mxu0 0.0
    %1142 = vmatpush1.msra.mxu0 0.0
    %1143 = vmatprep.subr.mxu0 0.0
    %1144 = vmatpush1.msra.mxu0 0.0
    %1145 = vmatprep.subr.mxu0 0.0
    %1146 = vmatpush1.msra.mxu0 0.0
    %1147 = vmatprep.subr.mxu0 0.0
    %1148 = vmatpush1.msra.mxu0 0.0
    %1149 = vmatprep.subr.mxu0 0.0
    %1150 = vmatpush1.msra.mxu0 0.0
    %1151 = vmatprep.subr.mxu0 0.0
    %1152 = vmatpush1.msra.mxu0 0.0
    %1153 = vmatprep.subr.mxu0 0.0
    %1154 = vmatpush1.msra.mxu0 0.0
    %1155 = vmatprep.subr.mxu0 0.0
    %1156 = vmatpush1.msra.mxu0 0.0
    %1157 = vmatprep.subr.mxu0 0.0
    %1158 = vmatpush1.msra.mxu0 0.0
    %1159 = vmatprep.subr.mxu0 0.0
    %1160 = vmatpush1.msra.mxu0 0.0
    %1161 = vmatprep.subr.mxu0 0.0
    %1162 = vmatpush1.msra.mxu0 0.0
    %1163 = vmatprep.subr.mxu0 0.0
    %1164 = vmatpush1.msra.mxu0 0.0
    %1165 = vmatprep.subr.mxu0 0.0
    %1166 = vmatpush1.msra.mxu0 0.0
    %1167 = vmatprep.subr.mxu0 0.0
    %1168 = vmatpush1.msra.mxu0 0.0
    %1169 = vmatprep.subr.mxu0 0.0
    %1170 = vmatpush1.msra.mxu0 0.0
    %1171 = vmatprep.subr.mxu0 0.0
    %1172 = vmatpush1.msra.mxu0 0.0
    %1173 = vmatprep.subr.mxu0 0.0
    %1174 = vmatpush1.msra.mxu0 0.0
    %1175 = vmatprep.subr.mxu0 0.0
    %1176 = vmatpush1.msra.mxu0 0.0
    %1177 = vmatprep.subr.mxu0 0.0
    %1178 = vmatpush1.msra.mxu0 0.0
    %1179 = vmatprep.subr.mxu0 0.0
    %1180 = vmatpush1.msra.mxu0 0.0
    %1181 = vmatprep.subr.mxu0 0.0
    %1182 = vmatpush1.msra.mxu0 0.0
    %1183 = vmatprep.subr.mxu0 0.0
    %1184 = vmatpush1.msra.mxu0 0.0
    %1185 = vmatprep.subr.mxu0 0.0
    %1186 = vmatpush1.msra.mxu0 0.0
    %1187 = vmatprep.mubr.f32.mxu0 0.0
    %1188 = vmatmul.mubr.f32.gmra.mrb[0].mxu0 %v1112
    %v1189 = vpop.f32.mrb[0].mxu0
    %v1190 = vadd.f32 %v1093, %v1189
    %v1191 = vpop.f32.mrb[0].mxu0
    %1192 = vmatprep.mubr.f32.mxu0 0.0
    %1193 = vmatmul.mubr.f32.gmra.mrb[0].mxu0 %v1115
    %v1194 = vpop.f32.mrb[0].mxu0
    %v1195 = vadd.f32 %v1098, %v1194
    %v1196 = vpop.f32.mrb[0].mxu0
    %1197 = vmatprep.mubr.f32.mxu0 0.0
    %1198 = vmatmul.mubr.f32.gmra.mrb[0].mxu0 %v1118
    %v1199 = vpop.f32.mrb[0].mxu0
    %v1200 = vadd.f32 %v1103, %v1199
    %v1201 = vpop.f32.mrb[0].mxu0
    %1202 = vmatprep.mubr.f32.mxu0 0.0
    %1203 = vmatmul.mubr.f32.gmra.mrb[0].mxu0 %v1121
    %v1204 = vpop.f32.mrb[0].mxu0
    %v1205 = vadd.f32 %v1108, %v1204
    %v1206 = vpop.f32.mrb[0].mxu0
    %1207 = vdwg.mxu0
    %v1208 = vmax.f32 %v1190, 0.0
    %v1209 = vmax.f32 %v1195, 0.0
    %v1210 = vmax.f32 %v1200, 0.0
    %v1211 = vmax.f32 %v1205, 0.0
    %v1212 = vld [vmem:[%s2 + $0xe8] sm:$0xff]
    %v1213 = vld [vmem:[%s2 + $0xf0] sm:$0xff]
    %v1214 = vld [vmem:[%s2 + $0xf8] sm:$0xff]
    %v1215 = vld [vmem:[%s2 + $0x100] sm:$0xff]
    %v1216 = vld [vmem:[%s2 + $0x108] sm:$0xff]
    %v1217 = vld [vmem:[%s2 + $0x110] sm:$0xff]
    %v1218 = vld [vmem:[%s2 + $0x118] sm:$0xff]
    %v1219 = vld [vmem:[%s2 + $0x120] sm:$0xff]
    %v1220 = vld [vmem:[%s2 + $0x128] sm:$0xff]
    %v1221 = vld [vmem:[%s2 + $0x130] sm:$0xff]
    %v1222 = vld [vmem:[%s2 + $0x138] sm:$0xff]
    %v1223 = vld [vmem:[%s2 + $0x140] sm:$0xff]
    %v1225 = vsel %vm743, %v1220, 0
    %v1228 = vsel %vm743, %v1221, 0
    %v1231 = vsel %vm743, %v1222, 0
    %v1234 = vsel %vm743, %v1223, 0
    %1236 = vmatprep.subr.mxu0 0.0
    %1237 = vmatpush1.msra.mxu0 %v528
    %1238 = vmatprep.subr.mxu0 0.0
    %1239 = vmatpush1.msra.mxu0 %v631
    %1240 = vmatprep.subr.mxu0 0.0
    %1241 = vmatpush1.msra.mxu0 %v758
    %1242 = vmatprep.subr.mxu0 0.0
    %1243 = vmatpush1.msra.mxu0 0.0
    %1244 = vmatprep.subr.mxu0 0.0
    %1245 = vmatpush1.msra.mxu0 0.0
    %1246 = vmatprep.subr.mxu0 0.0
    %1247 = vmatpush1.msra.mxu0 0.0
    %1248 = vmatprep.subr.mxu0 0.0
    %1249 = vmatpush1.msra.mxu0 0.0
    %1250 = vmatprep.subr.mxu0 0.0
    %1251 = vmatpush1.msra.mxu0 0.0
    %1252 = vmatprep.subr.mxu0 0.0
    %1253 = vmatpush1.msra.mxu0 0.0
    %1254 = vmatprep.subr.mxu0 0.0
    %1255 = vmatpush1.msra.mxu0 0.0
    %1256 = vmatprep.subr.mxu0 0.0
    %1257 = vmatpush1.msra.mxu0 0.0
    %1258 = vmatprep.subr.mxu0 0.0
    %1259 = vmatpush1.msra.mxu0 0.0
    %1260 = vmatprep.subr.mxu0 0.0
    %1261 = vmatpush1.msra.mxu0 0.0
    %1262 = vmatprep.subr.mxu0 0.0
    %1263 = vmatpush1.msra.mxu0 0.0
    %1264 = vmatprep.subr.mxu0 0.0
    %1265 = vmatpush1.msra.mxu0 0.0
    %1266 = vmatprep.subr.mxu0 0.0
    %1267 = vmatpush1.msra.mxu0 0.0
    %1268 = vmatprep.subr.mxu0 0.0
    %1269 = vmatpush1.msra.mxu0 0.0
    %1270 = vmatprep.subr.mxu0 0.0
    %1271 = vmatpush1.msra.mxu0 0.0
    %1272 = vmatprep.subr.mxu0 0.0
    %1273 = vmatpush1.msra.mxu0 0.0
    %1274 = vmatprep.subr.mxu0 0.0
    %1275 = vmatpush1.msra.mxu0 0.0
    %1276 = vmatprep.subr.mxu0 0.0
    %1277 = vmatpush1.msra.mxu0 0.0
    %1278 = vmatprep.subr.mxu0 0.0
    %1279 = vmatpush1.msra.mxu0 0.0
    %1280 = vmatprep.subr.mxu0 0.0
    %1281 = vmatpush1.msra.mxu0 0.0
    %1282 = vmatprep.subr.mxu0 0.0
    %1283 = vmatpush1.msra.mxu0 0.0
    %1284 = vmatprep.subr.mxu0 0.0
    %1285 = vmatpush1.msra.mxu0 0.0
    %1286 = vmatprep.subr.mxu0 0.0
    %1287 = vmatpush1.msra.mxu0 0.0
    %1288 = vmatprep.subr.mxu0 0.0
    %1289 = vmatpush1.msra.mxu0 0.0
    %1290 = vmatprep.subr.mxu0 0.0
    %1291 = vmatpush1.msra.mxu0 0.0
    %1292 = vmatprep.subr.mxu0 0.0
    %1293 = vmatpush1.msra.mxu0 0.0
    %1294 = vmatprep.subr.mxu0 0.0
    %1295 = vmatpush1.msra.mxu0 0.0
    %1296 = vmatprep.subr.mxu0 0.0
    %1297 = vmatpush1.msra.mxu0 0.0
    %1298 = vmatprep.subr.mxu0 0.0
    %1299 = vmatpush1.msra.mxu0 0.0
    %1300 = vmatprep.mubr.f32.mxu0 0.0
    %1301 = vmatmul.mubr.f32.gmra.mrb[0].mxu0 %v1225
    %v1302 = vpop.f32.mrb[0].mxu0
    %v1303 = vadd.f32 0.0, %v1302
    %v1304 = vpop.f32.mrb[0].mxu0
    %1305 = vmatprep.mubr.f32.mxu0 0.0
    %1306 = vmatmul.mubr.f32.gmra.mrb[0].mxu0 %v1228
    %v1307 = vpop.f32.mrb[0].mxu0
    %v1308 = vadd.f32 0.0, %v1307
    %v1309 = vpop.f32.mrb[0].mxu0
    %1310 = vmatprep.mubr.f32.mxu0 0.0
    %1311 = vmatmul.mubr.f32.gmra.mrb[0].mxu0 %v1231
    %v1312 = vpop.f32.mrb[0].mxu0
    %v1313 = vadd.f32 0.0, %v1312
    %v1314 = vpop.f32.mrb[0].mxu0
    %1315 = vmatprep.mubr.f32.mxu0 0.0
    %1316 = vmatmul.mubr.f32.gmra.mrb[0].mxu0 %v1234
    %v1317 = vpop.f32.mrb[0].mxu0
    %v1318 = vadd.f32 0.0, %v1317
    %v1319 = vpop.f32.mrb[0].mxu0
    %1320 = vdwg.mxu0
    %v1322 = vsel %vm743, %v1216, 0
    %v1325 = vsel %vm743, %v1217, 0
    %v1328 = vsel %vm743, %v1218, 0
    %v1331 = vsel %vm743, %v1219, 0
    %1333 = vmatprep.subr.mxu0 0.0
    %1334 = vmatpush1.msra.mxu0 %v217
    %1335 = vmatprep.subr.mxu0 0.0
    %1336 = vmatpush1.msra.mxu0 %v321
    %1337 = vmatprep.subr.mxu0 0.0
    %1338 = vmatpush1.msra.mxu0 %v858
    %1339 = vmatprep.subr.mxu0 0.0
    %1340 = vmatpush1.msra.mxu0 0.0
    %1341 = vmatprep.subr.mxu0 0.0
    %1342 = vmatpush1.msra.mxu0 0.0
    %1343 = vmatprep.subr.mxu0 0.0
    %1344 = vmatpush1.msra.mxu0 0.0
    %1345 = vmatprep.subr.mxu0 0.0
    %1346 = vmatpush1.msra.mxu0 0.0
    %1347 = vmatprep.subr.mxu0 0.0
    %1348 = vmatpush1.msra.mxu0 0.0
    %1349 = vmatprep.subr.mxu0 0.0
    %1350 = vmatpush1.msra.mxu0 0.0
    %1351 = vmatprep.subr.mxu0 0.0
    %1352 = vmatpush1.msra.mxu0 0.0
    %1353 = vmatprep.subr.mxu0 0.0
    %1354 = vmatpush1.msra.mxu0 0.0
    %1355 = vmatprep.subr.mxu0 0.0
    %1356 = vmatpush1.msra.mxu0 0.0
    %1357 = vmatprep.subr.mxu0 0.0
    %1358 = vmatpush1.msra.mxu0 0.0
    %1359 = vmatprep.subr.mxu0 0.0
    %1360 = vmatpush1.msra.mxu0 0.0
    %1361 = vmatprep.subr.mxu0 0.0
    %1362 = vmatpush1.msra.mxu0 0.0
    %1363 = vmatprep.subr.mxu0 0.0
    %1364 = vmatpush1.msra.mxu0 0.0
    %1365 = vmatprep.subr.mxu0 0.0
    %1366 = vmatpush1.msra.mxu0 0.0
    %1367 = vmatprep.subr.mxu0 0.0
    %1368 = vmatpush1.msra.mxu0 0.0
    %1369 = vmatprep.subr.mxu0 0.0
    %1370 = vmatpush1.msra.mxu0 0.0
    %1371 = vmatprep.subr.mxu0 0.0
    %1372 = vmatpush1.msra.mxu0 0.0
    %1373 = vmatprep.subr.mxu0 0.0
    %1374 = vmatpush1.msra.mxu0 0.0
    %1375 = vmatprep.subr.mxu0 0.0
    %1376 = vmatpush1.msra.mxu0 0.0
    %1377 = vmatprep.subr.mxu0 0.0
    %1378 = vmatpush1.msra.mxu0 0.0
    %1379 = vmatprep.subr.mxu0 0.0
    %1380 = vmatpush1.msra.mxu0 0.0
    %1381 = vmatprep.subr.mxu0 0.0
    %1382 = vmatpush1.msra.mxu0 0.0
    %1383 = vmatprep.subr.mxu0 0.0
    %1384 = vmatpush1.msra.mxu0 0.0
    %1385 = vmatprep.subr.mxu0 0.0
    %1386 = vmatpush1.msra.mxu0 0.0
    %1387 = vmatprep.subr.mxu0 0.0
    %1388 = vmatpush1.msra.mxu0 0.0
    %1389 = vmatprep.subr.mxu0 0.0
    %1390 = vmatpush1.msra.mxu0 0.0
    %1391 = vmatprep.subr.mxu0 0.0
    %1392 = vmatpush1.msra.mxu0 0.0
    %1393 = vmatprep.subr.mxu0 0.0
    %1394 = vmatpush1.msra.mxu0 0.0
    %1395 = vmatprep.subr.mxu0 0.0
    %1396 = vmatpush1.msra.mxu0 0.0
    %1397 = vmatprep.mubr.f32.mxu0 0.0
    %1398 = vmatmul.mubr.f32.gmra.mrb[0].mxu0 %v1322
    %v1399 = vpop.f32.mrb[0].mxu0
    %v1400 = vadd.f32 %v1303, %v1399
    %v1401 = vpop.f32.mrb[0].mxu0
    %1402 = vmatprep.mubr.f32.mxu0 0.0
    %1403 = vmatmul.mubr.f32.gmra.mrb[0].mxu0 %v1325
    %v1404 = vpop.f32.mrb[0].mxu0
    %v1405 = vadd.f32 %v1308, %v1404
    %v1406 = vpop.f32.mrb[0].mxu0
    %1407 = vmatprep.mubr.f32.mxu0 0.0
    %1408 = vmatmul.mubr.f32.gmra.mrb[0].mxu0 %v1328
    %v1409 = vpop.f32.mrb[0].mxu0
    %v1410 = vadd.f32 %v1313, %v1409
    %v1411 = vpop.f32.mrb[0].mxu0
    %1412 = vmatprep.mubr.f32.mxu0 0.0
    %1413 = vmatmul.mubr.f32.gmra.mrb[0].mxu0 %v1331
    %v1414 = vpop.f32.mrb[0].mxu0
    %v1415 = vadd.f32 %v1318, %v1414
    %v1416 = vpop.f32.mrb[0].mxu0
    %1417 = vdwg.mxu0
    %v1418 = vld [vmem:[%s2 + $0x148] sm:$0xff]
    %v1419 = vld [vmem:[%s2 + $0x150] sm:$0xff]
    %v1420 = vld [vmem:[%s2 + $0x158] sm:$0xff]
    %v1421 = vld [vmem:[%s2 + $0x160] sm:$0xff]
    %v1423 = vsel %vm20, %v1418, 0
    %v1426 = vsel %vm20, %v1419, 0
    %v1429 = vsel %vm20, %v1420, 0
    %v1432 = vsel %vm20, %v1421, 0
    %1434 = vmatprep.subr.mxu0 0.0
    %1435 = vmatpush1.msra.mxu0 %v32
    %1436 = vmatprep.subr.mxu0 0.0
    %1437 = vmatpush1.msra.mxu0 0.0
    %1438 = vmatprep.subr.mxu0 0.0
    %1439 = vmatpush1.msra.mxu0 0.0
    %1440 = vmatprep.subr.mxu0 0.0
    %1441 = vmatpush1.msra.mxu0 0.0
    %1442 = vmatprep.subr.mxu0 0.0
    %1443 = vmatpush1.msra.mxu0 0.0
    %1444 = vmatprep.subr.mxu0 0.0
    %1445 = vmatpush1.msra.mxu0 0.0
    %1446 = vmatprep.subr.mxu0 0.0
    %1447 = vmatpush1.msra.mxu0 0.0
    %1448 = vmatprep.subr.mxu0 0.0
    %1449 = vmatpush1.msra.mxu0 0.0
    %1450 = vmatprep.subr.mxu0 0.0
    %1451 = vmatpush1.msra.mxu0 0.0
    %1452 = vmatprep.subr.mxu0 0.0
    %1453 = vmatpush1.msra.mxu0 0.0
    %1454 = vmatprep.subr.mxu0 0.0
    %1455 = vmatpush1.msra.mxu0 0.0
    %1456 = vmatprep.subr.mxu0 0.0
    %1457 = vmatpush1.msra.mxu0 0.0
    %1458 = vmatprep.subr.mxu0 0.0
    %1459 = vmatpush1.msra.mxu0 0.0
    %1460 = vmatprep.subr.mxu0 0.0
    %1461 = vmatpush1.msra.mxu0 0.0
    %1462 = vmatprep.subr.mxu0 0.0
    %1463 = vmatpush1.msra.mxu0 0.0
    %1464 = vmatprep.subr.mxu0 0.0
    %1465 = vmatpush1.msra.mxu0 0.0
    %1466 = vmatprep.subr.mxu0 0.0
    %1467 = vmatpush1.msra.mxu0 0.0
    %1468 = vmatprep.subr.mxu0 0.0
    %1469 = vmatpush1.msra.mxu0 0.0
    %1470 = vmatprep.subr.mxu0 0.0
    %1471 = vmatpush1.msra.mxu0 0.0
    %1472 = vmatprep.subr.mxu0 0.0
    %1473 = vmatpush1.msra.mxu0 0.0
    %1474 = vmatprep.subr.mxu0 0.0
    %1475 = vmatpush1.msra.mxu0 0.0
    %1476 = vmatprep.subr.mxu0 0.0
    %1477 = vmatpush1.msra.mxu0 0.0
    %1478 = vmatprep.subr.mxu0 0.0
    %1479 = vmatpush1.msra.mxu0 0.0
    %1480 = vmatprep.subr.mxu0 0.0
    %1481 = vmatpush1.msra.mxu0 0.0
    %1482 = vmatprep.subr.mxu0 0.0
    %1483 = vmatpush1.msra.mxu0 0.0
    %1484 = vmatprep.subr.mxu0 0.0
    %1485 = vmatpush1.msra.mxu0 0.0
    %1486 = vmatprep.subr.mxu0 0.0
    %1487 = vmatpush1.msra.mxu0 0.0
    %1488 = vmatprep.subr.mxu0 0.0
    %1489 = vmatpush1.msra.mxu0 0.0
    %1490 = vmatprep.subr.mxu0 0.0
    %1491 = vmatpush1.msra.mxu0 0.0
    %1492 = vmatprep.subr.mxu0 0.0
    %1493 = vmatpush1.msra.mxu0 0.0
    %1494 = vmatprep.subr.mxu0 0.0
    %1495 = vmatpush1.msra.mxu0 0.0
    %1496 = vmatprep.subr.mxu0 0.0
    %1497 = vmatpush1.msra.mxu0 0.0
    %1498 = vmatprep.mubr.f32.mxu0 0.0
    %1499 = vmatmul.mubr.f32.gmra.mrb[0].mxu0 %v1423
    %v1500 = vpop.f32.mrb[0].mxu0
    %v1501 = vadd.f32 0.0, %v1500
    %v1502 = vpop.f32.mrb[0].mxu0
    %1503 = vmatprep.mubr.f32.mxu0 0.0
    %1504 = vmatmul.mubr.f32.gmra.mrb[0].mxu0 %v1426
    %v1505 = vpop.f32.mrb[0].mxu0
    %v1506 = vadd.f32 0.0, %v1505
    %v1507 = vpop.f32.mrb[0].mxu0
    %1508 = vmatprep.mubr.f32.mxu0 0.0
    %1509 = vmatmul.mubr.f32.gmra.mrb[0].mxu0 %v1429
    %v1510 = vpop.f32.mrb[0].mxu0
    %v1511 = vadd.f32 0.0, %v1510
    %v1512 = vpop.f32.mrb[0].mxu0
    %1513 = vmatprep.mubr.f32.mxu0 0.0
    %1514 = vmatmul.mubr.f32.gmra.mrb[0].mxu0 %v1432
    %v1515 = vpop.f32.mrb[0].mxu0
    %v1516 = vadd.f32 0.0, %v1515
    %v1517 = vpop.f32.mrb[0].mxu0
    %1518 = vdwg.mxu0
    %v1519 = vadd.f32 %v1400, %v1501
    %v1520 = vadd.f32 %v1405, %v1506
    %v1521 = vadd.f32 %v1410, %v1511
    %v1522 = vadd.f32 %v1415, %v1516
    %v1524 = vsel %vm1110, %v1212, 0
    %v1527 = vsel %vm1110, %v1213, 0
    %v1530 = vsel %vm1110, %v1214, 0
    %v1533 = vsel %vm1110, %v1215, 0
    %1535 = vmatprep.subr.mxu0 0.0
    %1536 = vmatpush1.msra.mxu0 %v1208
    %1537 = vmatprep.subr.mxu0 0.0
    %1538 = vmatpush1.msra.mxu0 %v1209
    %1539 = vmatprep.subr.mxu0 0.0
    %1540 = vmatpush1.msra.mxu0 %v1210
    %1541 = vmatprep.subr.mxu0 0.0
    %1542 = vmatpush1.msra.mxu0 %v1211
    %1543 = vmatprep.subr.mxu0 0.0
    %1544 = vmatpush1.msra.mxu0 0.0
    %1545 = vmatprep.subr.mxu0 0.0
    %1546 = vmatpush1.msra.mxu0 0.0
    %1547 = vmatprep.subr.mxu0 0.0
    %1548 = vmatpush1.msra.mxu0 0.0
    %1549 = vmatprep.subr.mxu0 0.0
    %1550 = vmatpush1.msra.mxu0 0.0
    %1551 = vmatprep.subr.mxu0 0.0
    %1552 = vmatpush1.msra.mxu0 0.0
    %1553 = vmatprep.subr.mxu0 0.0
    %1554 = vmatpush1.msra.mxu0 0.0
    %1555 = vmatprep.subr.mxu0 0.0
    %1556 = vmatpush1.msra.mxu0 0.0
    %1557 = vmatprep.subr.mxu0 0.0
    %1558 = vmatpush1.msra.mxu0 0.0
    %1559 = vmatprep.subr.mxu0 0.0
    %1560 = vmatpush1.msra.mxu0 0.0
    %1561 = vmatprep.subr.mxu0 0.0
    %1562 = vmatpush1.msra.mxu0 0.0
    %1563 = vmatprep.subr.mxu0 0.0
    %1564 = vmatpush1.msra.mxu0 0.0
    %1565 = vmatprep.subr.mxu0 0.0
    %1566 = vmatpush1.msra.mxu0 0.0
    %1567 = vmatprep.subr.mxu0 0.0
    %1568 = vmatpush1.msra.mxu0 0.0
    %1569 = vmatprep.subr.mxu0 0.0
    %1570 = vmatpush1.msra.mxu0 0.0
    %1571 = vmatprep.subr.mxu0 0.0
    %1572 = vmatpush1.msra.mxu0 0.0
    %1573 = vmatprep.subr.mxu0 0.0
    %1574 = vmatpush1.msra.mxu0 0.0
    %1575 = vmatprep.subr.mxu0 0.0
    %1576 = vmatpush1.msra.mxu0 0.0
    %1577 = vmatprep.subr.mxu0 0.0
    %1578 = vmatpush1.msra.mxu0 0.0
    %1579 = vmatprep.subr.mxu0 0.0
    %1580 = vmatpush1.msra.mxu0 0.0
    %1581 = vmatprep.subr.mxu0 0.0
    %1582 = vmatpush1.msra.mxu0 0.0
    %1583 = vmatprep.subr.mxu0 0.0
    %1584 = vmatpush1.msra.mxu0 0.0
    %1585 = vmatprep.subr.mxu0 0.0
    %1586 = vmatpush1.msra.mxu0 0.0
    %1587 = vmatprep.subr.mxu0 0.0
    %1588 = vmatpush1.msra.mxu0 0.0
    %1589 = vmatprep.subr.mxu0 0.0
    %1590 = vmatpush1.msra.mxu0 0.0
    %1591 = vmatprep.subr.mxu0 0.0
    %1592 = vmatpush1.msra.mxu0 0.0
    %1593 = vmatprep.subr.mxu0 0.0
    %1594 = vmatpush1.msra.mxu0 0.0
    %1595 = vmatprep.subr.mxu0 0.0
    %1596 = vmatpush1.msra.mxu0 0.0
    %1597 = vmatprep.subr.mxu0 0.0
    %1598 = vmatpush1.msra.mxu0 0.0
    %1599 = vmatprep.mubr.f32.mxu0 0.0
    %1600 = vmatmul.mubr.f32.gmra.mrb[0].mxu0 %v1524
    %v1601 = vpop.f32.mrb[0].mxu0
    %v1602 = vadd.f32 %v1519, %v1601
    %v1603 = vpop.f32.mrb[0].mxu0
    %1604 = vmatprep.mubr.f32.mxu0 0.0
    %1605 = vmatmul.mubr.f32.gmra.mrb[0].mxu0 %v1527
    %v1606 = vpop.f32.mrb[0].mxu0
    %v1607 = vadd.f32 %v1520, %v1606
    %v1608 = vpop.f32.mrb[0].mxu0
    %1609 = vmatprep.mubr.f32.mxu0 0.0
    %1610 = vmatmul.mubr.f32.gmra.mrb[0].mxu0 %v1530
    %v1611 = vpop.f32.mrb[0].mxu0
    %v1612 = vadd.f32 %v1521, %v1611
    %v1613 = vpop.f32.mrb[0].mxu0
    %1614 = vmatprep.mubr.f32.mxu0 0.0
    %1615 = vmatmul.mubr.f32.gmra.mrb[0].mxu0 %v1533
    %v1616 = vpop.f32.mrb[0].mxu0
    %v1617 = vadd.f32 %v1522, %v1616
    %v1618 = vpop.f32.mrb[0].mxu0
    %1619 = vdwg.mxu0
    %v1620 = vld [vmem:[%s2 + $0x168] sm:$0xff]
    %v1621 = vld [vmem:[%s2 + $0x170] sm:$0xff]
    %v1622 = vld [vmem:[%s2 + $0x178] sm:$0xff]
    %v1623 = vld [vmem:[%s2 + $0x180] sm:$0xff]
    %1625 = vset.pattern.permute.xlu0 0
    %1626 = vperm.xlu0 %1625, %v1620
    %v1627 = vpop.permute.xlu0 %1626
    %1630 = vset.pattern.permute.xlu0 0
    %1631 = vperm.xlu0 %1630, %v1621
    %v1632 = vpop.permute.xlu0 %1631
    %1635 = vset.pattern.permute.xlu0 0
    %1636 = vperm.xlu0 %1635, %v1622
    %v1637 = vpop.permute.xlu0 %1636
    %1640 = vset.pattern.permute.xlu0 0
    %1641 = vperm.xlu0 %1640, %v1623
    %v1642 = vpop.permute.xlu0 %1641
    %v1644 = vadd.f32 %v1602, %v1627
    %v1645 = vadd.f32 %v1607, %v1632
    %v1646 = vadd.f32 %v1612, %v1637
    %v1647 = vadd.f32 %v1617, %v1642
    %v1648 = vmax.f32 %v1644, 0.0
    %v1649 = vmax.f32 %v1645, 0.0
    %v1650 = vmax.f32 %v1646, 0.0
    %v1651 = vmax.f32 %v1647, 0.0
    %v1652 = vld [vmem:[%s2 + $0x188] sm:$0xff]
    %v1653 = vld [vmem:[%s2 + $0x190] sm:$0xff]
    %v1654 = vld [vmem:[%s2 + $0x198] sm:$0xff]
    %v1655 = vld [vmem:[%s2 + $0x1a0] sm:$0xff]
    %v1656 = vld [vmem:[%s2 + $0x1a8] sm:$0xff]
    %v1657 = vld [vmem:[%s2 + $0x1b0] sm:$0xff]
    %v1658 = vld [vmem:[%s2 + $0x1b8] sm:$0xff]
    %v1659 = vld [vmem:[%s2 + $0x1c0] sm:$0xff]
    %1661 = vset.pattern.permute.xlu0 0
    %1662 = vperm.xlu0 %1661, %v1656
    %v1663 = vpop.permute.xlu0 %1662
    %1666 = vset.pattern.permute.xlu0 0
    %1667 = vperm.xlu0 %1666, %v1657
    %v1668 = vpop.permute.xlu0 %1667
    %1671 = vset.pattern.permute.xlu0 0
    %1672 = vperm.xlu0 %1671, %v1658
    %v1673 = vpop.permute.xlu0 %1672
    %1676 = vset.pattern.permute.xlu0 0
    %1677 = vperm.xlu0 %1676, %v1659
    %v1678 = vpop.permute.xlu0 %1677
    %v1681 = vsel %vm1110, %v1652, 0
    %v1684 = vsel %vm1110, %v1653, 0
    %v1687 = vsel %vm1110, %v1654, 0
    %v1690 = vsel %vm1110, %v1655, 0
    %1692 = vmatprep.subr.mxu0 0.0
    %1693 = vmatpush1.msra.mxu0 %v1648
    %1694 = vmatprep.subr.mxu0 0.0
    %1695 = vmatpush1.msra.mxu0 %v1649
    %1696 = vmatprep.subr.mxu0 0.0
    %1697 = vmatpush1.msra.mxu0 %v1650
    %1698 = vmatprep.subr.mxu0 0.0
    %1699 = vmatpush1.msra.mxu0 %v1651
    %1700 = vmatprep.subr.mxu0 0.0
    %1701 = vmatpush1.msra.mxu0 0.0
    %1702 = vmatprep.subr.mxu0 0.0
    %1703 = vmatpush1.msra.mxu0 0.0
    %1704 = vmatprep.subr.mxu0 0.0
    %1705 = vmatpush1.msra.mxu0 0.0
    %1706 = vmatprep.subr.mxu0 0.0
    %1707 = vmatpush1.msra.mxu0 0.0
    %1708 = vmatprep.subr.mxu0 0.0
    %1709 = vmatpush1.msra.mxu0 0.0
    %1710 = vmatprep.subr.mxu0 0.0
    %1711 = vmatpush1.msra.mxu0 0.0
    %1712 = vmatprep.subr.mxu0 0.0
    %1713 = vmatpush1.msra.mxu0 0.0
    %1714 = vmatprep.subr.mxu0 0.0
    %1715 = vmatpush1.msra.mxu0 0.0
    %1716 = vmatprep.subr.mxu0 0.0
    %1717 = vmatpush1.msra.mxu0 0.0
    %1718 = vmatprep.subr.mxu0 0.0
    %1719 = vmatpush1.msra.mxu0 0.0
    %1720 = vmatprep.subr.mxu0 0.0
    %1721 = vmatpush1.msra.mxu0 0.0
    %1722 = vmatprep.subr.mxu0 0.0
    %1723 = vmatpush1.msra.mxu0 0.0
    %1724 = vmatprep.subr.mxu0 0.0
    %1725 = vmatpush1.msra.mxu0 0.0
    %1726 = vmatprep.subr.mxu0 0.0
    %1727 = vmatpush1.msra.mxu0 0.0
    %1728 = vmatprep.subr.mxu0 0.0
    %1729 = vmatpush1.msra.mxu0 0.0
    %1730 = vmatprep.subr.mxu0 0.0
    %1731 = vmatpush1.msra.mxu0 0.0
    %1732 = vmatprep.subr.mxu0 0.0
    %1733 = vmatpush1.msra.mxu0 0.0
    %1734 = vmatprep.subr.mxu0 0.0
    %1735 = vmatpush1.msra.mxu0 0.0
    %1736 = vmatprep.subr.mxu0 0.0
    %1737 = vmatpush1.msra.mxu0 0.0
    %1738 = vmatprep.subr.mxu0 0.0
    %1739 = vmatpush1.msra.mxu0 0.0
    %1740 = vmatprep.subr.mxu0 0.0
    %1741 = vmatpush1.msra.mxu0 0.0
    %1742 = vmatprep.subr.mxu0 0.0
    %1743 = vmatpush1.msra.mxu0 0.0
    %1744 = vmatprep.subr.mxu0 0.0
    %1745 = vmatpush1.msra.mxu0 0.0
    %1746 = vmatprep.subr.mxu0 0.0
    %1747 = vmatpush1.msra.mxu0 0.0
    %1748 = vmatprep.subr.mxu0 0.0
    %1749 = vmatpush1.msra.mxu0 0.0
    %1750 = vmatprep.subr.mxu0 0.0
    %1751 = vmatpush1.msra.mxu0 0.0
    %1752 = vmatprep.subr.mxu0 0.0
    %1753 = vmatpush1.msra.mxu0 0.0
    %1754 = vmatprep.subr.mxu0 0.0
    %1755 = vmatpush1.msra.mxu0 0.0
    %1756 = vmatprep.mubr.f32.mxu0 0.0
    %1757 = vmatmul.mubr.f32.gmra.mrb[0].mxu0 %v1681
    %v1758 = vpop.f32.mrb[0].mxu0
    %v1759 = vadd.f32 %v1663, %v1758
    %v1760 = vpop.f32.mrb[0].mxu0
    %1761 = vmatprep.mubr.f32.mxu0 0.0
    %1762 = vmatmul.mubr.f32.gmra.mrb[0].mxu0 %v1684
    %v1763 = vpop.f32.mrb[0].mxu0
    %v1764 = vadd.f32 %v1668, %v1763
    %v1765 = vpop.f32.mrb[0].mxu0
    %1766 = vmatprep.mubr.f32.mxu0 0.0
    %1767 = vmatmul.mubr.f32.gmra.mrb[0].mxu0 %v1687
    %v1768 = vpop.f32.mrb[0].mxu0
    %v1769 = vadd.f32 %v1673, %v1768
    %v1770 = vpop.f32.mrb[0].mxu0
    %1771 = vmatprep.mubr.f32.mxu0 0.0
    %1772 = vmatmul.mubr.f32.gmra.mrb[0].mxu0 %v1690
    %v1773 = vpop.f32.mrb[0].mxu0
    %v1774 = vadd.f32 %v1678, %v1773
    %v1775 = vpop.f32.mrb[0].mxu0
    %1776 = vdwg.mxu0
    %v1777 = vmax.f32 %v1759, 0.0
    %v1778 = vmax.f32 %v1764, 0.0
    %v1779 = vmax.f32 %v1769, 0.0
    %v1780 = vmax.f32 %v1774, 0.0
    %v1781 = vld [vmem:[%s2 + $0x1c8] sm:$0x1]
    %v1782 = vld [vmem:[%s2 + $0x1d0] sm:$0x1]
    %1784 = vset.pattern.permute.xlu0 0
    %1785 = vperm.xlu0 %1784, %v1782
    %v1786 = vpop.permute.xlu0 %1785
    %v1789 = vsel %vm1110, %v1781, 0
    %1791 = vmatprep.subr.mxu0 0.0
    %1792 = vmatpush1.msra.mxu0 %v1777
    %1793 = vmatprep.subr.mxu0 0.0
    %1794 = vmatpush1.msra.mxu0 %v1778
    %1795 = vmatprep.subr.mxu0 0.0
    %1796 = vmatpush1.msra.mxu0 %v1779
    %1797 = vmatprep.subr.mxu0 0.0
    %1798 = vmatpush1.msra.mxu0 %v1780
    %1799 = vmatprep.subr.mxu0 0.0
    %1800 = vmatpush1.msra.mxu0 0.0
    %1801 = vmatprep.subr.mxu0 0.0
    %1802 = vmatpush1.msra.mxu0 0.0
    %1803 = vmatprep.subr.mxu0 0.0
    %1804 = vmatpush1.msra.mxu0 0.0
    %1805 = vmatprep.subr.mxu0 0.0
    %1806 = vmatpush1.msra.mxu0 0.0
    %1807 = vmatprep.subr.mxu0 0.0
    %1808 = vmatpush1.msra.mxu0 0.0
    %1809 = vmatprep.subr.mxu0 0.0
    %1810 = vmatpush1.msra.mxu0 0.0
    %1811 = vmatprep.subr.mxu0 0.0
    %1812 = vmatpush1.msra.mxu0 0.0
    %1813 = vmatprep.subr.mxu0 0.0
    %1814 = vmatpush1.msra.mxu0 0.0
    %1815 = vmatprep.subr.mxu0 0.0
    %1816 = vmatpush1.msra.mxu0 0.0
    %1817 = vmatprep.subr.mxu0 0.0
    %1818 = vmatpush1.msra.mxu0 0.0
    %1819 = vmatprep.subr.mxu0 0.0
    %1820 = vmatpush1.msra.mxu0 0.0
    %1821 = vmatprep.subr.mxu0 0.0
    %1822 = vmatpush1.msra.mxu0 0.0
    %1823 = vmatprep.subr.mxu0 0.0
    %1824 = vmatpush1.msra.mxu0 0.0
    %1825 = vmatprep.subr.mxu0 0.0
    %1826 = vmatpush1.msra.mxu0 0.0
    %1827 = vmatprep.subr.mxu0 0.0
    %1828 = vmatpush1.msra.mxu0 0.0
    %1829 = vmatprep.subr.mxu0 0.0
    %1830 = vmatpush1.msra.mxu0 0.0
    %1831 = vmatprep.subr.mxu0 0.0
    %1832 = vmatpush1.msra.mxu0 0.0
    %1833 = vmatprep.subr.mxu0 0.0
    %1834 = vmatpush1.msra.mxu0 0.0
    %1835 = vmatprep.subr.mxu0 0.0
    %1836 = vmatpush1.msra.mxu0 0.0
    %1837 = vmatprep.subr.mxu0 0.0
    %1838 = vmatpush1.msra.mxu0 0.0
    %1839 = vmatprep.subr.mxu0 0.0
    %1840 = vmatpush1.msra.mxu0 0.0
    %1841 = vmatprep.subr.mxu0 0.0
    %1842 = vmatpush1.msra.mxu0 0.0
    %1843 = vmatprep.subr.mxu0 0.0
    %1844 = vmatpush1.msra.mxu0 0.0
    %1845 = vmatprep.subr.mxu0 0.0
    %1846 = vmatpush1.msra.mxu0 0.0
    %1847 = vmatprep.subr.mxu0 0.0
    %1848 = vmatpush1.msra.mxu0 0.0
    %1849 = vmatprep.subr.mxu0 0.0
    %1850 = vmatpush1.msra.mxu0 0.0
    %1851 = vmatprep.subr.mxu0 0.0
    %1852 = vmatpush1.msra.mxu0 0.0
    %1853 = vmatprep.subr.mxu0 0.0
    %1854 = vmatpush1.msra.mxu0 0.0
    %1855 = vmatprep.mubr.f32.mxu0 0.0
    %1856 = vmatmul.mubr.f32.gmra.mrb[0].mxu0 %v1789
    %v1857 = vpop.f32.mrb[0].mxu0
    %v1858 = vadd.f32 %v1786, %v1857
    %v1859 = vpop.f32.mrb[0].mxu0
    %1860 = vdwg.mxu0
    %v1861 = vmax.f32 %v1858, 0.0
    %v1862 = vld [vmem:[%s2 + $0x1d8] sm:$0xff]
    %v1863 = vld [vmem:[%s2 + $0x1e0] sm:$0xff]
    %v1864 = vld [vmem:[%s2 + $0x1e8] sm:$0xff]
    %v1865 = vld [vmem:[%s2 + $0x1f0] sm:$0xff]
    %v1866 = vld [vmem:[%s2 + $0x1f8] sm:$0xff]
    %v1867 = vld [vmem:[%s2 + $0x200] sm:$0xff]
    %v1868 = vld [vmem:[%s2 + $0x208] sm:$0xff]
    %v1869 = vld [vmem:[%s2 + $0x210] sm:$0xff]
    %1871 = vset.pattern.permute.xlu0 0
    %1872 = vperm.xlu0 %1871, %v1866
    %v1873 = vpop.permute.xlu0 %1872
    %1876 = vset.pattern.permute.xlu0 0
    %1877 = vperm.xlu0 %1876, %v1867
    %v1878 = vpop.permute.xlu0 %1877
    %1881 = vset.pattern.permute.xlu0 0
    %1882 = vperm.xlu0 %1881, %v1868
    %v1883 = vpop.permute.xlu0 %1882
    %1886 = vset.pattern.permute.xlu0 0
    %1887 = vperm.xlu0 %1886, %v1869
    %v1888 = vpop.permute.xlu0 %1887
    %v1891 = vsel %vm1110, %v1862, 0
    %v1894 = vsel %vm1110, %v1863, 0
    %v1897 = vsel %vm1110, %v1864, 0
    %v1900 = vsel %vm1110, %v1865, 0
    %1902 = vmatprep.subr.mxu0 0.0
    %1903 = vmatpush1.msra.mxu0 %v1777
    %1904 = vmatprep.subr.mxu0 0.0
    %1905 = vmatpush1.msra.mxu0 %v1778
    %1906 = vmatprep.subr.mxu0 0.0
    %1907 = vmatpush1.msra.mxu0 %v1779
    %1908 = vmatprep.subr.mxu0 0.0
    %1909 = vmatpush1.msra.mxu0 %v1780
    %1910 = vmatprep.subr.mxu0 0.0
    %1911 = vmatpush1.msra.mxu0 0.0
    %1912 = vmatprep.subr.mxu0 0.0
    %1913 = vmatpush1.msra.mxu0 0.0
    %1914 = vmatprep.subr.mxu0 0.0
    %1915 = vmatpush1.msra.mxu0 0.0
    %1916 = vmatprep.subr.mxu0 0.0
    %1917 = vmatpush1.msra.mxu0 0.0
    %1918 = vmatprep.subr.mxu0 0.0
    %1919 = vmatpush1.msra.mxu0 0.0
    %1920 = vmatprep.subr.mxu0 0.0
    %1921 = vmatpush1.msra.mxu0 0.0
    %1922 = vmatprep.subr.mxu0 0.0
    %1923 = vmatpush1.msra.mxu0 0.0
    %1924 = vmatprep.subr.mxu0 0.0
    %1925 = vmatpush1.msra.mxu0 0.0
    %1926 = vmatprep.subr.mxu0 0.0
    %1927 = vmatpush1.msra.mxu0 0.0
    %1928 = vmatprep.subr.mxu0 0.0
    %1929 = vmatpush1.msra.mxu0 0.0
    %1930 = vmatprep.subr.mxu0 0.0
    %1931 = vmatpush1.msra.mxu0 0.0
    %1932 = vmatprep.subr.mxu0 0.0
    %1933 = vmatpush1.msra.mxu0 0.0
    %1934 = vmatprep.subr.mxu0 0.0
    %1935 = vmatpush1.msra.mxu0 0.0
    %1936 = vmatprep.subr.mxu0 0.0
    %1937 = vmatpush1.msra.mxu0 0.0
    %1938 = vmatprep.subr.mxu0 0.0
    %1939 = vmatpush1.msra.mxu0 0.0
    %1940 = vmatprep.subr.mxu0 0.0
    %1941 = vmatpush1.msra.mxu0 0.0
    %1942 = vmatprep.subr.mxu0 0.0
    %1943 = vmatpush1.msra.mxu0 0.0
    %1944 = vmatprep.subr.mxu0 0.0
    %1945 = vmatpush1.msra.mxu0 0.0
    %1946 = vmatprep.subr.mxu0 0.0
    %1947 = vmatpush1.msra.mxu0 0.0
    %1948 = vmatprep.subr.mxu0 0.0
    %1949 = vmatpush1.msra.mxu0 0.0
    %1950 = vmatprep.subr.mxu0 0.0
    %1951 = vmatpush1.msra.mxu0 0.0
    %1952 = vmatprep.subr.mxu0 0.0
    %1953 = vmatpush1.msra.mxu0 0.0
    %1954 = vmatprep.subr.mxu0 0.0
    %1955 = vmatpush1.msra.mxu0 0.0
    %1956 = vmatprep.subr.mxu0 0.0
    %1957 = vmatpush1.msra.mxu0 0.0
    %1958 = vmatprep.subr.mxu0 0.0
    %1959 = vmatpush1.msra.mxu0 0.0
    %1960 = vmatprep.subr.mxu0 0.0
    %1961 = vmatpush1.msra.mxu0 0.0
    %1962 = vmatprep.subr.mxu0 0.0
    %1963 = vmatpush1.msra.mxu0 0.0
    %1964 = vmatprep.subr.mxu0 0.0
    %1965 = vmatpush1.msra.mxu0 0.0
    %1966 = vmatprep.mubr.f32.mxu0 0.0
    %1967 = vmatmul.mubr.f32.gmra.mrb[0].mxu0 %v1891
    %v1968 = vpop.f32.mrb[0].mxu0
    %v1969 = vadd.f32 %v1873, %v1968
    %v1970 = vpop.f32.mrb[0].mxu0
    %1971 = vmatprep.mubr.f32.mxu0 0.0
    %1972 = vmatmul.mubr.f32.gmra.mrb[0].mxu0 %v1894
    %v1973 = vpop.f32.mrb[0].mxu0
    %v1974 = vadd.f32 %v1878, %v1973
    %v1975 = vpop.f32.mrb[0].mxu0
    %1976 = vmatprep.mubr.f32.mxu0 0.0
    %1977 = vmatmul.mubr.f32.gmra.mrb[0].mxu0 %v1897
    %v1978 = vpop.f32.mrb[0].mxu0
    %v1979 = vadd.f32 %v1883, %v1978
    %v1980 = vpop.f32.mrb[0].mxu0
    %1981 = vmatprep.mubr.f32.mxu0 0.0
    %1982 = vmatmul.mubr.f32.gmra.mrb[0].mxu0 %v1900
    %v1983 = vpop.f32.mrb[0].mxu0
    %v1984 = vadd.f32 %v1888, %v1983
    %v1985 = vpop.f32.mrb[0].mxu0
    %1986 = vdwg.mxu0
    %v1987 = vld [vmem:[%s2 + $0x18] sm:$0xff]
    %v1988 = vld [vmem:[%s2 + $0x20] sm:$0xf]
    %v1990 = vsel %vm20, %v1987, 0
    %v1993 = vsel %vm20, %v1988, 0
    %v1996 = vsel %vm30, %v16, 0
    %1998 = vmatprep.subr.mxu0 0.0
    %1999 = vmatpush1.msra.mxu0 %v1996
    %2000 = vmatprep.subr.mxu0 0.0
    %2001 = vmatpush1.msra.mxu0 0.0
    %2002 = vmatprep.subr.mxu0 0.0
    %2003 = vmatpush1.msra.mxu0 0.0
    %2004 = vmatprep.subr.mxu0 0.0
    %2005 = vmatpush1.msra.mxu0 0.0
    %2006 = vmatprep.subr.mxu0 0.0
    %2007 = vmatpush1.msra.mxu0 0.0
    %2008 = vmatprep.subr.mxu0 0.0
    %2009 = vmatpush1.msra.mxu0 0.0
    %2010 = vmatprep.subr.mxu0 0.0
    %2011 = vmatpush1.msra.mxu0 0.0
    %2012 = vmatprep.subr.mxu0 0.0
    %2013 = vmatpush1.msra.mxu0 0.0
    %2014 = vmatprep.subr.mxu0 0.0
    %2015 = vmatpush1.msra.mxu0 0.0
    %2016 = vmatprep.subr.mxu0 0.0
    %2017 = vmatpush1.msra.mxu0 0.0
    %2018 = vmatprep.subr.mxu0 0.0
    %2019 = vmatpush1.msra.mxu0 0.0
    %2020 = vmatprep.subr.mxu0 0.0
    %2021 = vmatpush1.msra.mxu0 0.0
    %2022 = vmatprep.subr.mxu0 0.0
    %2023 = vmatpush1.msra.mxu0 0.0
    %2024 = vmatprep.subr.mxu0 0.0
    %2025 = vmatpush1.msra.mxu0 0.0
    %2026 = vmatprep.subr.mxu0 0.0
    %2027 = vmatpush1.msra.mxu0 0.0
    %2028 = vmatprep.subr.mxu0 0.0
    %2029 = vmatpush1.msra.mxu0 0.0
    %2030 = vmatprep.subr.mxu0 0.0
    %2031 = vmatpush1.msra.mxu0 0.0
    %2032 = vmatprep.subr.mxu0 0.0
    %2033 = vmatpush1.msra.mxu0 0.0
    %2034 = vmatprep.subr.mxu0 0.0
    %2035 = vmatpush1.msra.mxu0 0.0
    %2036 = vmatprep.subr.mxu0 0.0
    %2037 = vmatpush1.msra.mxu0 0.0
    %2038 = vmatprep.subr.mxu0 0.0
    %2039 = vmatpush1.msra.mxu0 0.0
    %2040 = vmatprep.subr.mxu0 0.0
    %2041 = vmatpush1.msra.mxu0 0.0
    %2042 = vmatprep.subr.mxu0 0.0
    %2043 = vmatpush1.msra.mxu0 0.0
    %2044 = vmatprep.subr.mxu0 0.0
    %2045 = vmatpush1.msra.mxu0 0.0
    %2046 = vmatprep.subr.mxu0 0.0
    %2047 = vmatpush1.msra.mxu0 0.0
    %2048 = vmatprep.subr.mxu0 0.0
    %2049 = vmatpush1.msra.mxu0 0.0
    %2050 = vmatprep.subr.mxu0 0.0
    %2051 = vmatpush1.msra.mxu0 0.0
    %2052 = vmatprep.subr.mxu0 0.0
    %2053 = vmatpush1.msra.mxu0 0.0
    %2054 = vmatprep.subr.mxu0 0.0
    %2055 = vmatpush1.msra.mxu0 0.0
    %2056 = vmatprep.subr.mxu0 0.0
    %2057 = vmatpush1.msra.mxu0 0.0
    %2058 = vmatprep.subr.mxu0 0.0
    %2059 = vmatpush1.msra.mxu0 0.0
    %2060 = vmatprep.subr.mxu0 0.0
    %2061 = vmatpush1.msra.mxu0 0.0
    %2062 = vmatprep.mubr.f32.mxu0 0.0
    %2063 = vmatmul.mubr.f32.gmra.mrb[0].mxu0 %v1990
    %v2064 = vpop.f32.mrb[0].mxu0
    %v2065 = vadd.f32 0.0, %v2064
    %v2066 = vpop.f32.mrb[0].mxu0
    %2067 = vmatprep.mubr.f32.mxu0 0.0
    %2068 = vmatmul.mubr.f32.gmra.mrb[0].mxu0 %v1993
    %v2069 = vpop.f32.mrb[0].mxu0
    %v2070 = vadd.f32 0.0, %v2069
    %v2071 = vpop.f32.mrb[0].mxu0
    %2072 = vdwg.mxu0
    %v2073 = vand.u32 2147483647, %v2065
    %vm2074 = vcmp.le.f32.partialorder %v2073, 0.7853982
    %vm2075 = vcmp.lt.s32.totalorder %v2065, 0
    %v2076 = vand.u32 %v2065, 2139095040
    %v2077 = vshrl.u32 %v2076, 23
    %v2078 = vsub.s32 %v2077, 127
    %v2079 = vand.u32 2147483647, %v2065
    %v2080 = vand.u32 %v2079, 8388607
    %v2081 = vor.u32 %v2080, 8388608
    %v2082 = vsub.s32 0, %v2081
    %v2083 = vadd.s32 %v2078, 1
    %vm2084 = vcmp.gt.s32.totalorder %v2083, 0
    %v2085 = vsel %vm2084, %v2083, 0
    %v2086 = vshrl.u32 %v2085, 5
    %v2087 = vand.u32 %v2085, 31
    %v2088 = vsub.s32 32, %v2087
    %v2089 = vshrl.u32 683565275, %v2088
    %v2090 = vshll.u32 683565275, %v2087
    %v2091 = vshrl.u32 2475754826, %v2088
    %v2092 = vor.u32 %v2090, %v2091
    %v2093 = vshll.u32 2475754826, %v2087
    %v2094 = vshrl.u32 2131351028, %v2088
    %v2095 = vor.u32 %v2093, %v2094
    %v2096 = vshll.u32 2131351028, %v2087
    %v2097 = vshrl.u32 2102212464, %v2088
    %v2098 = vor.u32 %v2096, %v2097
    %v2099 = vshll.u32 2102212464, %v2087
    %v2100 = vshrl.u32 920167782, %v2088
    %v2101 = vor.u32 %v2099, %v2100
    %v2102 = vshll.u32 920167782, %v2087
    %v2103 = vshrl.u32 1326507024, %v2088
    %v2104 = vor.u32 %v2102, %v2103
    %vm2105 = vcmp.lt.s32.totalorder %v2086, 1
    %vm2106 = vcmp.lt.s32.totalorder %v2086, 2
    %vm2107 = vcmp.lt.s32.totalorder %v2086, 3
    %vm2108 = vcmp.lt.s32.totalorder %v2086, 4
    %v2109 = vsel %vm2105, %v2089, %v2092
    %v2110 = vsel %vm2108, %v2098, 2102212464
    %v2111 = vsel %vm2107, %v2095, %v2110
    %v2112 = vsel %vm2106, %v2109, %v2111
    %v2113 = vsel %vm2105, %v2092, %v2095
    %v2114 = vsel %vm2108, %v2101, 920167782
    %v2115 = vsel %vm2107, %v2098, %v2114
    %v2116 = vsel %vm2106, %v2113, %v2115
    %v2117 = vsel %vm2105, %v2095, %v2098
    %v2118 = vsel %vm2108, %v2104, 1326507024
    %v2119 = vsel %vm2107, %v2101, %v2118
    %v2120 = vsel %vm2106, %v2117, %v2119
    %v2121 = vshll.u32 %v2081, 8
    %v2122 = vmul.u32.u64.compose %v2121, %v2120
    %v2123 = vextract.low.u32 %v2122
    %v2124 = vextract.high.u32 %v2122
    %v2125 = vmul.u32.u64.compose %v2121, %v2116
    %v2126 = vextract.low.u32 %v2125
    %v2127 = vextract.high.u32 %v2125
    %v2128 = vmul.u32 %v2121, %v2112
    %v2129 = vadd.s32 %v2124, %v2126
    %vm2130 = vc.u32 %v2124, %v2126
    %v2131 = vadd.s32 %v2127, 1
    %v2132 = vsel %vm2130, %v2131, %v2127
    %v2133 = vadd.s32 %v2128, %v2132
    %v2134 = vadd.s32 %v2133, 536870912
    %v2135 = vshrl.u32 %v2134, 30
    %v2136 = vshll.u32 %v2135, 30
    %v2137 = vsub.s32 %v2133, %v2136
    %vm2138 = vcmp.lt.s32.totalorder %v2137, 0
    %v2139 = vsub.s32 0, %v2137
    %v2140 = vsel %vm2138, %v2139, %v2137
    %v2141 = vclz %v2140
    %v2142 = vsub.s32 %v2141, 2
    %vm2143 = vcmp.gt.s32.totalorder 0, %v2142
    %v2144 = vsel %vm2143, 0, %v2142
    %v2145 = vsub.s32 32, %v2144
    %v2146 = vshll.u32 %v2137, %v2144
    %v2147 = vshrl.u32 %v2129, %v2145
    %v2148 = vor.u32 %v2146, %v2147
    %v2149 = vsub.s32 4294967266, %v2144
    %v2150 = vadd.s32 %v2149, 127
    %v2151 = vshll.u32 %v2150, 23
    %v2152 = vor.u32 4788187, %v2151
    %v2153 = vand.u32 2147483647, %v2152
    %v2155 = vcvt.s32.f32 %v2148
    %v2156 = vmul.f32 %v2155, %v2153
    %v2157 = vxor.u32 %v2156, 2147483648
    %v2158 = vsel %vm2075, %v2157, %v2156
    %v2159 = vsub.s32 4, %v2135
    %v2160 = vsel %vm2075, %v2159, %v2135
    %v2161 = vsel %vm2074, %v2065, %v2158
    %v2162 = vsel %vm2074, 0, %v2160
    %v2163 = vcosq.f32.pop %v2161
    %v2164 = vsinq.f32.pop %v2161
    %vm2165 = vweird.f32 %v2065
    %v2166 = vadd.s32 %v2162, 3
    %v2167 = vand.u32 %v2166, 3
    %vm2168 = vcmp.lt.s32.totalorder %v2167, 2
    %vm2169 = vcmp.eq.s32.totalorder %v2167, 0
    %v2170 = vxor.u32 %v2164, 2147483648
    %v2171 = vsel %vm2169, %v2163, %v2170
    %vm2172 = vcmp.eq.s32.totalorder %v2167, 2
    %v2173 = vxor.u32 %v2163, 2147483648
    %v2174 = vsel %vm2172, %v2173, %v2164
    %v2175 = vsel %vm2168, %v2171, %v2174
    %v2176 = vsel %vm2165, nan, %v2175
    %v2177 = vand.u32 2147483647, %v2070
    %vm2178 = vcmp.le.f32.partialorder %v2177, 0.7853982
    %vm2179 = vcmp.lt.s32.totalorder %v2070, 0
    %v2180 = vand.u32 %v2070, 2139095040
    %v2181 = vshrl.u32 %v2180, 23
    %v2182 = vsub.s32 %v2181, 127
    %v2183 = vand.u32 2147483647, %v2070
    %v2184 = vand.u32 %v2183, 8388607
    %v2185 = vor.u32 %v2184, 8388608
    %v2186 = vsub.s32 0, %v2185
    %v2187 = vadd.s32 %v2182, 1
    %vm2188 = vcmp.gt.s32.totalorder %v2187, 0
    %v2189 = vsel %vm2188, %v2187, 0
    %v2190 = vshrl.u32 %v2189, 5
    %v2191 = vand.u32 %v2189, 31
    %v2192 = vsub.s32 32, %v2191
    %v2193 = vshrl.u32 683565275, %v2192
    %v2194 = vshll.u32 683565275, %v2191
    %v2195 = vshrl.u32 2475754826, %v2192
    %v2196 = vor.u32 %v2194, %v2195
    %v2197 = vshll.u32 2475754826, %v2191
    %v2198 = vshrl.u32 2131351028, %v2192
    %v2199 = vor.u32 %v2197, %v2198
    %v2200 = vshll.u32 2131351028, %v2191
    %v2201 = vshrl.u32 2102212464, %v2192
    %v2202 = vor.u32 %v2200, %v2201
    %v2203 = vshll.u32 2102212464, %v2191
    %v2204 = vshrl.u32 920167782, %v2192
    %v2205 = vor.u32 %v2203, %v2204
    %v2206 = vshll.u32 920167782, %v2191
    %v2207 = vshrl.u32 1326507024, %v2192
    %v2208 = vor.u32 %v2206, %v2207
    %vm2209 = vcmp.lt.s32.totalorder %v2190, 1
    %vm2210 = vcmp.lt.s32.totalorder %v2190, 2
    %vm2211 = vcmp.lt.s32.totalorder %v2190, 3
    %vm2212 = vcmp.lt.s32.totalorder %v2190, 4
    %v2213 = vsel %vm2209, %v2193, %v2196
    %v2214 = vsel %vm2212, %v2202, 2102212464
    %v2215 = vsel %vm2211, %v2199, %v2214
    %v2216 = vsel %vm2210, %v2213, %v2215
    %v2217 = vsel %vm2209, %v2196, %v2199
    %v2218 = vsel %vm2212, %v2205, 920167782
    %v2219 = vsel %vm2211, %v2202, %v2218
    %v2220 = vsel %vm2210, %v2217, %v2219
    %v2221 = vsel %vm2209, %v2199, %v2202
    %v2222 = vsel %vm2212, %v2208, 1326507024
    %v2223 = vsel %vm2211, %v2205, %v2222
    %v2224 = vsel %vm2210, %v2221, %v2223
    %v2225 = vshll.u32 %v2185, 8
    %v2226 = vmul.u32.u64.compose %v2225, %v2224
    %v2227 = vextract.low.u32 %v2226
    %v2228 = vextract.high.u32 %v2226
    %v2229 = vmul.u32.u64.compose %v2225, %v2220
    %v2230 = vextract.low.u32 %v2229
    %v2231 = vextract.high.u32 %v2229
    %v2232 = vmul.u32 %v2225, %v2216
    %v2233 = vadd.s32 %v2228, %v2230
    %vm2234 = vc.u32 %v2228, %v2230
    %v2235 = vadd.s32 %v2231, 1
    %v2236 = vsel %vm2234, %v2235, %v2231
    %v2237 = vadd.s32 %v2232, %v2236
    %v2238 = vadd.s32 %v2237, 536870912
    %v2239 = vshrl.u32 %v2238, 30
    %v2240 = vshll.u32 %v2239, 30
    %v2241 = vsub.s32 %v2237, %v2240
    %vm2242 = vcmp.lt.s32.totalorder %v2241, 0
    %v2243 = vsub.s32 0, %v2241
    %v2244 = vsel %vm2242, %v2243, %v2241
    %v2245 = vclz %v2244
    %v2246 = vsub.s32 %v2245, 2
    %vm2247 = vcmp.gt.s32.totalorder 0, %v2246
    %v2248 = vsel %vm2247, 0, %v2246
    %v2249 = vsub.s32 32, %v2248
    %v2250 = vshll.u32 %v2241, %v2248
    %v2251 = vshrl.u32 %v2233, %v2249
    %v2252 = vor.u32 %v2250, %v2251
    %v2253 = vsub.s32 4294967266, %v2248
    %v2254 = vadd.s32 %v2253, 127
    %v2255 = vshll.u32 %v2254, 23
    %v2256 = vor.u32 4788187, %v2255
    %v2257 = vand.u32 2147483647, %v2256
    %v2259 = vcvt.s32.f32 %v2252
    %v2260 = vmul.f32 %v2259, %v2257
    %v2261 = vxor.u32 %v2260, 2147483648
    %v2262 = vsel %vm2179, %v2261, %v2260
    %v2263 = vsub.s32 4, %v2239
    %v2264 = vsel %vm2179, %v2263, %v2239
    %v2265 = vsel %vm2178, %v2070, %v2262
    %v2266 = vsel %vm2178, 0, %v2264
    %v2267 = vcosq.f32.pop %v2265
    %v2268 = vsinq.f32.pop %v2265
    %vm2269 = vweird.f32 %v2070
    %v2270 = vadd.s32 %v2266, 3
    %v2271 = vand.u32 %v2270, 3
    %vm2272 = vcmp.lt.s32.totalorder %v2271, 2
    %vm2273 = vcmp.eq.s32.totalorder %v2271, 0
    %v2274 = vxor.u32 %v2268, 2147483648
    %v2275 = vsel %vm2273, %v2267, %v2274
    %vm2276 = vcmp.eq.s32.totalorder %v2271, 2
    %v2277 = vxor.u32 %v2267, 2147483648
    %v2278 = vsel %vm2276, %v2277, %v2268
    %v2279 = vsel %vm2272, %v2275, %v2278
    %v2280 = vsel %vm2269, nan, %v2279
    %v2281 = vand.u32 2147483647, %v2065
    %vm2282 = vcmp.le.f32.partialorder %v2281, 0.7853982
    %vm2283 = vcmp.lt.s32.totalorder %v2065, 0
    %v2284 = vand.u32 %v2065, 2139095040
    %v2285 = vshrl.u32 %v2284, 23
    %v2286 = vsub.s32 %v2285, 127
    %v2287 = vand.u32 2147483647, %v2065
    %v2288 = vand.u32 %v2287, 8388607
    %v2289 = vor.u32 %v2288, 8388608
    %v2290 = vsub.s32 0, %v2289
    %v2291 = vadd.s32 %v2286, 1
    %vm2292 = vcmp.gt.s32.totalorder %v2291, 0
    %v2293 = vsel %vm2292, %v2291, 0
    %v2294 = vshrl.u32 %v2293, 5
    %v2295 = vand.u32 %v2293, 31
    %v2296 = vsub.s32 32, %v2295
    %v2297 = vshrl.u32 683565275, %v2296
    %v2298 = vshll.u32 683565275, %v2295
    %v2299 = vshrl.u32 2475754826, %v2296
    %v2300 = vor.u32 %v2298, %v2299
    %v2301 = vshll.u32 2475754826, %v2295
    %v2302 = vshrl.u32 2131351028, %v2296
    %v2303 = vor.u32 %v2301, %v2302
    %v2304 = vshll.u32 2131351028, %v2295
    %v2305 = vshrl.u32 2102212464, %v2296
    %v2306 = vor.u32 %v2304, %v2305
    %v2307 = vshll.u32 2102212464, %v2295
    %v2308 = vshrl.u32 920167782, %v2296
    %v2309 = vor.u32 %v2307, %v2308
    %v2310 = vshll.u32 920167782, %v2295
    %v2311 = vshrl.u32 1326507024, %v2296
    %v2312 = vor.u32 %v2310, %v2311
    %vm2313 = vcmp.lt.s32.totalorder %v2294, 1
    %vm2314 = vcmp.lt.s32.totalorder %v2294, 2
    %vm2315 = vcmp.lt.s32.totalorder %v2294, 3
    %vm2316 = vcmp.lt.s32.totalorder %v2294, 4
    %v2317 = vsel %vm2313, %v2297, %v2300
    %v2318 = vsel %vm2316, %v2306, 2102212464
    %v2319 = vsel %vm2315, %v2303, %v2318
    %v2320 = vsel %vm2314, %v2317, %v2319
    %v2321 = vsel %vm2313, %v2300, %v2303
    %v2322 = vsel %vm2316, %v2309, 920167782
    %v2323 = vsel %vm2315, %v2306, %v2322
    %v2324 = vsel %vm2314, %v2321, %v2323
    %v2325 = vsel %vm2313, %v2303, %v2306
    %v2326 = vsel %vm2316, %v2312, 1326507024
    %v2327 = vsel %vm2315, %v2309, %v2326
    %v2328 = vsel %vm2314, %v2325, %v2327
    %v2329 = vshll.u32 %v2289, 8
    %v2330 = vmul.u32.u64.compose %v2329, %v2328
    %v2331 = vextract.low.u32 %v2330
    %v2332 = vextract.high.u32 %v2330
    %v2333 = vmul.u32.u64.compose %v2329, %v2324
    %v2334 = vextract.low.u32 %v2333
    %v2335 = vextract.high.u32 %v2333
    %v2336 = vmul.u32 %v2329, %v2320
    %v2337 = vadd.s32 %v2332, %v2334
    %vm2338 = vc.u32 %v2332, %v2334
    %v2339 = vadd.s32 %v2335, 1
    %v2340 = vsel %vm2338, %v2339, %v2335
    %v2341 = vadd.s32 %v2336, %v2340
    %v2342 = vadd.s32 %v2341, 536870912
    %v2343 = vshrl.u32 %v2342, 30
    %v2344 = vshll.u32 %v2343, 30
    %v2345 = vsub.s32 %v2341, %v2344
    %vm2346 = vcmp.lt.s32.totalorder %v2345, 0
    %v2347 = vsub.s32 0, %v2345
    %v2348 = vsel %vm2346, %v2347, %v2345
    %v2349 = vclz %v2348
    %v2350 = vsub.s32 %v2349, 2
    %vm2351 = vcmp.gt.s32.totalorder 0, %v2350
    %v2352 = vsel %vm2351, 0, %v2350
    %v2353 = vsub.s32 32, %v2352
    %v2354 = vshll.u32 %v2345, %v2352
    %v2355 = vshrl.u32 %v2337, %v2353
    %v2356 = vor.u32 %v2354, %v2355
    %v2357 = vsub.s32 4294967266, %v2352
    %v2358 = vadd.s32 %v2357, 127
    %v2359 = vshll.u32 %v2358, 23
    %v2360 = vor.u32 4788187, %v2359
    %v2361 = vand.u32 2147483647, %v2360
    %v2363 = vcvt.s32.f32 %v2356
    %v2364 = vmul.f32 %v2363, %v2361
    %v2365 = vxor.u32 %v2364, 2147483648
    %v2366 = vsel %vm2283, %v2365, %v2364
    %v2367 = vsub.s32 4, %v2343
    %v2368 = vsel %vm2283, %v2367, %v2343
    %v2369 = vsel %vm2282, %v2065, %v2366
    %v2370 = vsel %vm2282, 0, %v2368
    %v2371 = vcosq.f32.pop %v2369
    %v2372 = vsinq.f32.pop %v2369
    %vm2373 = vweird.f32 %v2065
    %v2374 = vand.u32 %v2370, 3
    %vm2375 = vcmp.lt.s32.totalorder %v2374, 2
    %vm2376 = vcmp.eq.s32.totalorder %v2374, 0
    %v2377 = vxor.u32 %v2372, 2147483648
    %v2378 = vsel %vm2376, %v2371, %v2377
    %vm2379 = vcmp.eq.s32.totalorder %v2374, 2
    %v2380 = vxor.u32 %v2371, 2147483648
    %v2381 = vsel %vm2379, %v2380, %v2372
    %v2382 = vsel %vm2375, %v2378, %v2381
    %v2383 = vsel %vm2373, nan, %v2382
    %v2384 = vand.u32 2147483647, %v2070
    %vm2385 = vcmp.le.f32.partialorder %v2384, 0.7853982
    %vm2386 = vcmp.lt.s32.totalorder %v2070, 0
    %v2387 = vand.u32 %v2070, 2139095040
    %v2388 = vshrl.u32 %v2387, 23
    %v2389 = vsub.s32 %v2388, 127
    %v2390 = vand.u32 2147483647, %v2070
    %v2391 = vand.u32 %v2390, 8388607
    %v2392 = vor.u32 %v2391, 8388608
    %v2393 = vsub.s32 0, %v2392
    %v2394 = vadd.s32 %v2389, 1
    %vm2395 = vcmp.gt.s32.totalorder %v2394, 0
    %v2396 = vsel %vm2395, %v2394, 0
    %v2397 = vshrl.u32 %v2396, 5
    %v2398 = vand.u32 %v2396, 31
    %v2399 = vsub.s32 32, %v2398
    %v2400 = vshrl.u32 683565275, %v2399
    %v2401 = vshll.u32 683565275, %v2398
    %v2402 = vshrl.u32 2475754826, %v2399
    %v2403 = vor.u32 %v2401, %v2402
    %v2404 = vshll.u32 2475754826, %v2398
    %v2405 = vshrl.u32 2131351028, %v2399
    %v2406 = vor.u32 %v2404, %v2405
    %v2407 = vshll.u32 2131351028, %v2398
    %v2408 = vshrl.u32 2102212464, %v2399
    %v2409 = vor.u32 %v2407, %v2408
    %v2410 = vshll.u32 2102212464, %v2398
    %v2411 = vshrl.u32 920167782, %v2399
    %v2412 = vor.u32 %v2410, %v2411
    %v2413 = vshll.u32 920167782, %v2398
    %v2414 = vshrl.u32 1326507024, %v2399
    %v2415 = vor.u32 %v2413, %v2414
    %vm2416 = vcmp.lt.s32.totalorder %v2397, 1
    %vm2417 = vcmp.lt.s32.totalorder %v2397, 2
    %vm2418 = vcmp.lt.s32.totalorder %v2397, 3
    %vm2419 = vcmp.lt.s32.totalorder %v2397, 4
    %v2420 = vsel %vm2416, %v2400, %v2403
    %v2421 = vsel %vm2419, %v2409, 2102212464
    %v2422 = vsel %vm2418, %v2406, %v2421
    %v2423 = vsel %vm2417, %v2420, %v2422
    %v2424 = vsel %vm2416, %v2403, %v2406
    %v2425 = vsel %vm2419, %v2412, 920167782
    %v2426 = vsel %vm2418, %v2409, %v2425
    %v2427 = vsel %vm2417, %v2424, %v2426
    %v2428 = vsel %vm2416, %v2406, %v2409
    %v2429 = vsel %vm2419, %v2415, 1326507024
    %v2430 = vsel %vm2418, %v2412, %v2429
    %v2431 = vsel %vm2417, %v2428, %v2430
    %v2432 = vshll.u32 %v2392, 8
    %v2433 = vmul.u32.u64.compose %v2432, %v2431
    %v2434 = vextract.low.u32 %v2433
    %v2435 = vextract.high.u32 %v2433
    %v2436 = vmul.u32.u64.compose %v2432, %v2427
    %v2437 = vextract.low.u32 %v2436
    %v2438 = vextract.high.u32 %v2436
    %v2439 = vmul.u32 %v2432, %v2423
    %v2440 = vadd.s32 %v2435, %v2437
    %vm2441 = vc.u32 %v2435, %v2437
    %v2442 = vadd.s32 %v2438, 1
    %v2443 = vsel %vm2441, %v2442, %v2438
    %v2444 = vadd.s32 %v2439, %v2443
    %v2445 = vadd.s32 %v2444, 536870912
    %v2446 = vshrl.u32 %v2445, 30
    %v2447 = vshll.u32 %v2446, 30
    %v2448 = vsub.s32 %v2444, %v2447
    %vm2449 = vcmp.lt.s32.totalorder %v2448, 0
    %v2450 = vsub.s32 0, %v2448
    %v2451 = vsel %vm2449, %v2450, %v2448
    %v2452 = vclz %v2451
    %v2453 = vsub.s32 %v2452, 2
    %vm2454 = vcmp.gt.s32.totalorder 0, %v2453
    %v2455 = vsel %vm2454, 0, %v2453
    %v2456 = vsub.s32 32, %v2455
    %v2457 = vshll.u32 %v2448, %v2455
    %v2458 = vshrl.u32 %v2440, %v2456
    %v2459 = vor.u32 %v2457, %v2458
    %v2460 = vsub.s32 4294967266, %v2455
    %v2461 = vadd.s32 %v2460, 127
    %v2462 = vshll.u32 %v2461, 23
    %v2463 = vor.u32 4788187, %v2462
    %v2464 = vand.u32 2147483647, %v2463
    %v2466 = vcvt.s32.f32 %v2459
    %v2467 = vmul.f32 %v2466, %v2464
    %v2468 = vxor.u32 %v2467, 2147483648
    %v2469 = vsel %vm2386, %v2468, %v2467
    %v2470 = vsub.s32 4, %v2446
    %v2471 = vsel %vm2386, %v2470, %v2446
    %v2472 = vsel %vm2385, %v2070, %v2469
    %v2473 = vsel %vm2385, 0, %v2471
    %v2474 = vcosq.f32.pop %v2472
    %v2475 = vsinq.f32.pop %v2472
    %vm2476 = vweird.f32 %v2070
    %v2477 = vand.u32 %v2473, 3
    %vm2478 = vcmp.lt.s32.totalorder %v2477, 2
    %vm2479 = vcmp.eq.s32.totalorder %v2477, 0
    %v2480 = vxor.u32 %v2475, 2147483648
    %v2481 = vsel %vm2479, %v2474, %v2480
    %vm2482 = vcmp.eq.s32.totalorder %v2477, 2
    %v2483 = vxor.u32 %v2474, 2147483648
    %v2484 = vsel %vm2482, %v2483, %v2475
    %v2485 = vsel %vm2478, %v2481, %v2484
    %v2486 = vsel %vm2476, nan, %v2485
    %v2487 = vld [vmem:[%s2 + $0x218] sm:$0xff]
    %v2488 = vld [vmem:[%s2 + $0x220] sm:$0xff]
    %v2489 = vld [vmem:[%s2 + $0x228] sm:$0xff]
    %v2490 = vld [vmem:[%s2 + $0x230] sm:$0xff]
    %vm2491 = vcmask 97280
    %v2493 = vsel %vm2491, %v2489, 0
    %v2496 = vsel %vm2491, %v2490, 0
    %vm2498 = vcmask 1043456
    %v2500 = vsel %vm2498, %v2280, 0
    %2502 = vmatprep.subr.mxu0 0.0
    %2503 = vmatpush1.msra.mxu0 %v2176
    %2504 = vmatprep.subr.mxu0 0.0
    %2505 = vmatpush1.msra.mxu0 %v2500
    %2506 = vmatprep.subr.mxu0 0.0
    %2507 = vmatpush1.msra.mxu0 0.0
    %2508 = vmatprep.subr.mxu0 0.0
    %2509 = vmatpush1.msra.mxu0 0.0
    %2510 = vmatprep.subr.mxu0 0.0
    %2511 = vmatpush1.msra.mxu0 0.0
    %2512 = vmatprep.subr.mxu0 0.0
    %2513 = vmatpush1.msra.mxu0 0.0
    %2514 = vmatprep.subr.mxu0 0.0
    %2515 = vmatpush1.msra.mxu0 0.0
    %2516 = vmatprep.subr.mxu0 0.0
    %2517 = vmatpush1.msra.mxu0 0.0
    %2518 = vmatprep.subr.mxu0 0.0
    %2519 = vmatpush1.msra.mxu0 0.0
    %2520 = vmatprep.subr.mxu0 0.0
    %2521 = vmatpush1.msra.mxu0 0.0
    %2522 = vmatprep.subr.mxu0 0.0
    %2523 = vmatpush1.msra.mxu0 0.0
    %2524 = vmatprep.subr.mxu0 0.0
    %2525 = vmatpush1.msra.mxu0 0.0
    %2526 = vmatprep.subr.mxu0 0.0
    %2527 = vmatpush1.msra.mxu0 0.0
    %2528 = vmatprep.subr.mxu0 0.0
    %2529 = vmatpush1.msra.mxu0 0.0
    %2530 = vmatprep.subr.mxu0 0.0
    %2531 = vmatpush1.msra.mxu0 0.0
    %2532 = vmatprep.subr.mxu0 0.0
    %2533 = vmatpush1.msra.mxu0 0.0
    %2534 = vmatprep.subr.mxu0 0.0
    %2535 = vmatpush1.msra.mxu0 0.0
    %2536 = vmatprep.subr.mxu0 0.0
    %2537 = vmatpush1.msra.mxu0 0.0
    %2538 = vmatprep.subr.mxu0 0.0
    %2539 = vmatpush1.msra.mxu0 0.0
    %2540 = vmatprep.subr.mxu0 0.0
    %2541 = vmatpush1.msra.mxu0 0.0
    %2542 = vmatprep.subr.mxu0 0.0
    %2543 = vmatpush1.msra.mxu0 0.0
    %2544 = vmatprep.subr.mxu0 0.0
    %2545 = vmatpush1.msra.mxu0 0.0
    %2546 = vmatprep.subr.mxu0 0.0
    %2547 = vmatpush1.msra.mxu0 0.0
    %2548 = vmatprep.subr.mxu0 0.0
    %2549 = vmatpush1.msra.mxu0 0.0
    %2550 = vmatprep.subr.mxu0 0.0
    %2551 = vmatpush1.msra.mxu0 0.0
    %2552 = vmatprep.subr.mxu0 0.0
    %2553 = vmatpush1.msra.mxu0 0.0
    %2554 = vmatprep.subr.mxu0 0.0
    %2555 = vmatpush1.msra.mxu0 0.0
    %2556 = vmatprep.subr.mxu0 0.0
    %2557 = vmatpush1.msra.mxu0 0.0
    %2558 = vmatprep.subr.mxu0 0.0
    %2559 = vmatpush1.msra.mxu0 0.0
    %2560 = vmatprep.subr.mxu0 0.0
    %2561 = vmatpush1.msra.mxu0 0.0
    %2562 = vmatprep.subr.mxu0 0.0
    %2563 = vmatpush1.msra.mxu0 0.0
    %2564 = vmatprep.subr.mxu0 0.0
    %2565 = vmatpush1.msra.mxu0 0.0
    %2566 = vmatprep.mubr.f32.mxu0 0.0
    %2567 = vmatmul.mubr.f32.gmra.mrb[0].mxu0 %v2493
    %v2568 = vpop.f32.mrb[0].mxu0
    %v2569 = vadd.f32 0.0, %v2568
    %v2570 = vpop.f32.mrb[0].mxu0
    %2571 = vmatprep.mubr.f32.mxu0 0.0
    %2572 = vmatmul.mubr.f32.gmra.mrb[0].mxu0 %v2496
    %v2573 = vpop.f32.mrb[0].mxu0
    %v2574 = vadd.f32 0.0, %v2573
    %v2575 = vpop.f32.mrb[0].mxu0
    %2576 = vdwg.mxu0
    %v2578 = vsel %vm1110, %v2487, 0
    %v2581 = vsel %vm1110, %v2488, 0
    %2583 = vmatprep.subr.mxu0 0.0
    %2584 = vmatpush1.msra.mxu0 %v1969
    %2585 = vmatprep.subr.mxu0 0.0
    %2586 = vmatpush1.msra.mxu0 %v1974
    %2587 = vmatprep.subr.mxu0 0.0
    %2588 = vmatpush1.msra.mxu0 %v1979
    %2589 = vmatprep.subr.mxu0 0.0
    %2590 = vmatpush1.msra.mxu0 %v1984
    %2591 = vmatprep.subr.mxu0 0.0
    %2592 = vmatpush1.msra.mxu0 0.0
    %2593 = vmatprep.subr.mxu0 0.0
    %2594 = vmatpush1.msra.mxu0 0.0
    %2595 = vmatprep.subr.mxu0 0.0
    %2596 = vmatpush1.msra.mxu0 0.0
    %2597 = vmatprep.subr.mxu0 0.0
    %2598 = vmatpush1.msra.mxu0 0.0
    %2599 = vmatprep.subr.mxu0 0.0
    %2600 = vmatpush1.msra.mxu0 0.0
    %2601 = vmatprep.subr.mxu0 0.0
    %2602 = vmatpush1.msra.mxu0 0.0
    %2603 = vmatprep.subr.mxu0 0.0
    %2604 = vmatpush1.msra.mxu0 0.0
    %2605 = vmatprep.subr.mxu0 0.0
    %2606 = vmatpush1.msra.mxu0 0.0
    %2607 = vmatprep.subr.mxu0 0.0
    %2608 = vmatpush1.msra.mxu0 0.0
    %2609 = vmatprep.subr.mxu0 0.0
    %2610 = vmatpush1.msra.mxu0 0.0
    %2611 = vmatprep.subr.mxu0 0.0
    %2612 = vmatpush1.msra.mxu0 0.0
    %2613 = vmatprep.subr.mxu0 0.0
    %2614 = vmatpush1.msra.mxu0 0.0
    %2615 = vmatprep.subr.mxu0 0.0
    %2616 = vmatpush1.msra.mxu0 0.0
    %2617 = vmatprep.subr.mxu0 0.0
    %2618 = vmatpush1.msra.mxu0 0.0
    %2619 = vmatprep.subr.mxu0 0.0
    %2620 = vmatpush1.msra.mxu0 0.0
    %2621 = vmatprep.subr.mxu0 0.0
    %2622 = vmatpush1.msra.mxu0 0.0
    %2623 = vmatprep.subr.mxu0 0.0
    %2624 = vmatpush1.msra.mxu0 0.0
    %2625 = vmatprep.subr.mxu0 0.0
    %2626 = vmatpush1.msra.mxu0 0.0
    %2627 = vmatprep.subr.mxu0 0.0
    %2628 = vmatpush1.msra.mxu0 0.0
    %2629 = vmatprep.subr.mxu0 0.0
    %2630 = vmatpush1.msra.mxu0 0.0
    %2631 = vmatprep.subr.mxu0 0.0
    %2632 = vmatpush1.msra.mxu0 0.0
    %2633 = vmatprep.subr.mxu0 0.0
    %2634 = vmatpush1.msra.mxu0 0.0
    %2635 = vmatprep.subr.mxu0 0.0
    %2636 = vmatpush1.msra.mxu0 0.0
    %2637 = vmatprep.subr.mxu0 0.0
    %2638 = vmatpush1.msra.mxu0 0.0
    %2639 = vmatprep.subr.mxu0 0.0
    %2640 = vmatpush1.msra.mxu0 0.0
    %2641 = vmatprep.subr.mxu0 0.0
    %2642 = vmatpush1.msra.mxu0 0.0
    %2643 = vmatprep.subr.mxu0 0.0
    %2644 = vmatpush1.msra.mxu0 0.0
    %2645 = vmatprep.subr.mxu0 0.0
    %2646 = vmatpush1.msra.mxu0 0.0
    %2647 = vmatprep.mubr.f32.mxu0 0.0
    %2648 = vmatmul.mubr.f32.gmra.mrb[0].mxu0 %v2578
    %v2649 = vpop.f32.mrb[0].mxu0
    %v2650 = vadd.f32 %v2569, %v2649
    %v2651 = vpop.f32.mrb[0].mxu0
    %2652 = vmatprep.mubr.f32.mxu0 0.0
    %2653 = vmatmul.mubr.f32.gmra.mrb[0].mxu0 %v2581
    %v2654 = vpop.f32.mrb[0].mxu0
    %v2655 = vadd.f32 %v2574, %v2654
    %v2656 = vpop.f32.mrb[0].mxu0
    %2657 = vdwg.mxu0
    %v2658 = vld [vmem:[%s2 + $0x238] sm:$0xff]
    %v2659 = vld [vmem:[%s2 + $0x240] sm:$0xff]
    %v2661 = vsel %vm2491, %v2658, 0
    %v2664 = vsel %vm2491, %v2659, 0
    %v2667 = vsel %vm2498, %v2486, 0
    %2669 = vmatprep.subr.mxu0 0.0
    %2670 = vmatpush1.msra.mxu0 %v2383
    %2671 = vmatprep.subr.mxu0 0.0
    %2672 = vmatpush1.msra.mxu0 %v2667
    %2673 = vmatprep.subr.mxu0 0.0
    %2674 = vmatpush1.msra.mxu0 0.0
    %2675 = vmatprep.subr.mxu0 0.0
    %2676 = vmatpush1.msra.mxu0 0.0
    %2677 = vmatprep.subr.mxu0 0.0
    %2678 = vmatpush1.msra.mxu0 0.0
    %2679 = vmatprep.subr.mxu0 0.0
    %2680 = vmatpush1.msra.mxu0 0.0
    %2681 = vmatprep.subr.mxu0 0.0
    %2682 = vmatpush1.msra.mxu0 0.0
    %2683 = vmatprep.subr.mxu0 0.0
    %2684 = vmatpush1.msra.mxu0 0.0
    %2685 = vmatprep.subr.mxu0 0.0
    %2686 = vmatpush1.msra.mxu0 0.0
    %2687 = vmatprep.subr.mxu0 0.0
    %2688 = vmatpush1.msra.mxu0 0.0
    %2689 = vmatprep.subr.mxu0 0.0
    %2690 = vmatpush1.msra.mxu0 0.0
    %2691 = vmatprep.subr.mxu0 0.0
    %2692 = vmatpush1.msra.mxu0 0.0
    %2693 = vmatprep.subr.mxu0 0.0
    %2694 = vmatpush1.msra.mxu0 0.0
    %2695 = vmatprep.subr.mxu0 0.0
    %2696 = vmatpush1.msra.mxu0 0.0
    %2697 = vmatprep.subr.mxu0 0.0
    %2698 = vmatpush1.msra.mxu0 0.0
    %2699 = vmatprep.subr.mxu0 0.0
    %2700 = vmatpush1.msra.mxu0 0.0
    %2701 = vmatprep.subr.mxu0 0.0
    %2702 = vmatpush1.msra.mxu0 0.0
    %2703 = vmatprep.subr.mxu0 0.0
    %2704 = vmatpush1.msra.mxu0 0.0
    %2705 = vmatprep.subr.mxu0 0.0
    %2706 = vmatpush1.msra.mxu0 0.0
    %2707 = vmatprep.subr.mxu0 0.0
    %2708 = vmatpush1.msra.mxu0 0.0
    %2709 = vmatprep.subr.mxu0 0.0
    %2710 = vmatpush1.msra.mxu0 0.0
    %2711 = vmatprep.subr.mxu0 0.0
    %2712 = vmatpush1.msra.mxu0 0.0
    %2713 = vmatprep.subr.mxu0 0.0
    %2714 = vmatpush1.msra.mxu0 0.0
    %2715 = vmatprep.subr.mxu0 0.0
    %2716 = vmatpush1.msra.mxu0 0.0
    %2717 = vmatprep.subr.mxu0 0.0
    %2718 = vmatpush1.msra.mxu0 0.0
    %2719 = vmatprep.subr.mxu0 0.0
    %2720 = vmatpush1.msra.mxu0 0.0
    %2721 = vmatprep.subr.mxu0 0.0
    %2722 = vmatpush1.msra.mxu0 0.0
    %2723 = vmatprep.subr.mxu0 0.0
    %2724 = vmatpush1.msra.mxu0 0.0
    %2725 = vmatprep.subr.mxu0 0.0
    %2726 = vmatpush1.msra.mxu0 0.0
    %2727 = vmatprep.subr.mxu0 0.0
    %2728 = vmatpush1.msra.mxu0 0.0
    %2729 = vmatprep.subr.mxu0 0.0
    %2730 = vmatpush1.msra.mxu0 0.0
    %2731 = vmatprep.subr.mxu0 0.0
    %2732 = vmatpush1.msra.mxu0 0.0
    %2733 = vmatprep.mubr.f32.mxu0 0.0
    %2734 = vmatmul.mubr.f32.gmra.mrb[0].mxu0 %v2661
    %v2735 = vpop.f32.mrb[0].mxu0
    %v2736 = vadd.f32 0.0, %v2735
    %v2737 = vpop.f32.mrb[0].mxu0
    %2738 = vmatprep.mubr.f32.mxu0 0.0
    %2739 = vmatmul.mubr.f32.gmra.mrb[0].mxu0 %v2664
    %v2740 = vpop.f32.mrb[0].mxu0
    %v2741 = vadd.f32 0.0, %v2740
    %v2742 = vpop.f32.mrb[0].mxu0
    %2743 = vdwg.mxu0
    %v2744 = vadd.f32 %v2650, %v2736
    %v2745 = vadd.f32 %v2655, %v2741
    %v2746 = vld [vmem:[%s2 + $0x248] sm:$0xff]
    %v2747 = vld [vmem:[%s2 + $0x250] sm:$0xff]
    %v2749 = vsel %vm20, %v2746, 0
    %v2752 = vsel %vm20, %v2747, 0
    %2754 = vmatprep.subr.mxu0 0.0
    %2755 = vmatpush1.msra.mxu0 %v1996
    %2756 = vmatprep.subr.mxu0 0.0
    %2757 = vmatpush1.msra.mxu0 0.0
    %2758 = vmatprep.subr.mxu0 0.0
    %2759 = vmatpush1.msra.mxu0 0.0
    %2760 = vmatprep.subr.mxu0 0.0
    %2761 = vmatpush1.msra.mxu0 0.0
    %2762 = vmatprep.subr.mxu0 0.0
    %2763 = vmatpush1.msra.mxu0 0.0
    %2764 = vmatprep.subr.mxu0 0.0
    %2765 = vmatpush1.msra.mxu0 0.0
    %2766 = vmatprep.subr.mxu0 0.0
    %2767 = vmatpush1.msra.mxu0 0.0
    %2768 = vmatprep.subr.mxu0 0.0
    %2769 = vmatpush1.msra.mxu0 0.0
    %2770 = vmatprep.subr.mxu0 0.0
    %2771 = vmatpush1.msra.mxu0 0.0
    %2772 = vmatprep.subr.mxu0 0.0
    %2773 = vmatpush1.msra.mxu0 0.0
    %2774 = vmatprep.subr.mxu0 0.0
    %2775 = vmatpush1.msra.mxu0 0.0
    %2776 = vmatprep.subr.mxu0 0.0
    %2777 = vmatpush1.msra.mxu0 0.0
    %2778 = vmatprep.subr.mxu0 0.0
    %2779 = vmatpush1.msra.mxu0 0.0
    %2780 = vmatprep.subr.mxu0 0.0
    %2781 = vmatpush1.msra.mxu0 0.0
    %2782 = vmatprep.subr.mxu0 0.0
    %2783 = vmatpush1.msra.mxu0 0.0
    %2784 = vmatprep.subr.mxu0 0.0
    %2785 = vmatpush1.msra.mxu0 0.0
    %2786 = vmatprep.subr.mxu0 0.0
    %2787 = vmatpush1.msra.mxu0 0.0
    %2788 = vmatprep.subr.mxu0 0.0
    %2789 = vmatpush1.msra.mxu0 0.0
    %2790 = vmatprep.subr.mxu0 0.0
    %2791 = vmatpush1.msra.mxu0 0.0
    %2792 = vmatprep.subr.mxu0 0.0
    %2793 = vmatpush1.msra.mxu0 0.0
    %2794 = vmatprep.subr.mxu0 0.0
    %2795 = vmatpush1.msra.mxu0 0.0
    %2796 = vmatprep.subr.mxu0 0.0
    %2797 = vmatpush1.msra.mxu0 0.0
    %2798 = vmatprep.subr.mxu0 0.0
    %2799 = vmatpush1.msra.mxu0 0.0
    %2800 = vmatprep.subr.mxu0 0.0
    %2801 = vmatpush1.msra.mxu0 0.0
    %2802 = vmatprep.subr.mxu0 0.0
    %2803 = vmatpush1.msra.mxu0 0.0
    %2804 = vmatprep.subr.mxu0 0.0
    %2805 = vmatpush1.msra.mxu0 0.0
    %2806 = vmatprep.subr.mxu0 0.0
    %2807 = vmatpush1.msra.mxu0 0.0
    %2808 = vmatprep.subr.mxu0 0.0
    %2809 = vmatpush1.msra.mxu0 0.0
    %2810 = vmatprep.subr.mxu0 0.0
    %2811 = vmatpush1.msra.mxu0 0.0
    %2812 = vmatprep.subr.mxu0 0.0
    %2813 = vmatpush1.msra.mxu0 0.0
    %2814 = vmatprep.subr.mxu0 0.0
    %2815 = vmatpush1.msra.mxu0 0.0
    %2816 = vmatprep.subr.mxu0 0.0
    %2817 = vmatpush1.msra.mxu0 0.0
    %2818 = vmatprep.mubr.f32.mxu0 0.0
    %2819 = vmatmul.mubr.f32.gmra.mrb[0].mxu0 %v2749
    %v2820 = vpop.f32.mrb[0].mxu0
    %v2821 = vadd.f32 0.0, %v2820
    %v2822 = vpop.f32.mrb[0].mxu0
    %2823 = vmatprep.mubr.f32.mxu0 0.0
    %2824 = vmatmul.mubr.f32.gmra.mrb[0].mxu0 %v2752
    %v2825 = vpop.f32.mrb[0].mxu0
    %v2826 = vadd.f32 0.0, %v2825
    %v2827 = vpop.f32.mrb[0].mxu0
    %2828 = vdwg.mxu0
    %v2829 = vadd.f32 %v2744, %v2821
    %v2830 = vadd.f32 %v2745, %v2826
    %v2831 = vld [vmem:[%s2 + $0x258] sm:$0xff]
    %v2832 = vld [vmem:[%s2 + $0x260] sm:$0xff]
    %2834 = vset.pattern.permute.xlu0 0
    %2835 = vperm.xlu0 %2834, %v2831
    %v2836 = vpop.permute.xlu0 %2835
    %2839 = vset.pattern.permute.xlu0 0
    %2840 = vperm.xlu0 %2839, %v2832
    %v2841 = vpop.permute.xlu0 %2840
    %v2843 = vadd.f32 %v2829, %v2836
    %v2844 = vadd.f32 %v2830, %v2841
    %v2845 = vmax.f32 %v2843, 0.0
    %v2846 = vmax.f32 %v2844, 0.0
    %v2847 = vld [vmem:[%s2 + $0x268] sm:$0x7]
    %v2848 = vld [vmem:[%s2 + $0x270] sm:$0x7]
    %2850 = vset.pattern.permute.xlu0 0
    %2851 = vperm.xlu0 %2850, %v2848
    %v2852 = vpop.permute.xlu0 %2851
    %vm2854 = vcmask 130048
    %v2856 = vsel %vm2854, %v2847, 0
    %2858 = vmatprep.subr.mxu0 0.0
    %2859 = vmatpush1.msra.mxu0 %v2845
    %2860 = vmatprep.subr.mxu0 0.0
    %2861 = vmatpush1.msra.mxu0 %v2846
    %2862 = vmatprep.subr.mxu0 0.0
    %2863 = vmatpush1.msra.mxu0 0.0
    %2864 = vmatprep.subr.mxu0 0.0
    %2865 = vmatpush1.msra.mxu0 0.0
    %2866 = vmatprep.subr.mxu0 0.0
    %2867 = vmatpush1.msra.mxu0 0.0
    %2868 = vmatprep.subr.mxu0 0.0
    %2869 = vmatpush1.msra.mxu0 0.0
    %2870 = vmatprep.subr.mxu0 0.0
    %2871 = vmatpush1.msra.mxu0 0.0
    %2872 = vmatprep.subr.mxu0 0.0
    %2873 = vmatpush1.msra.mxu0 0.0
    %2874 = vmatprep.subr.mxu0 0.0
    %2875 = vmatpush1.msra.mxu0 0.0
    %2876 = vmatprep.subr.mxu0 0.0
    %2877 = vmatpush1.msra.mxu0 0.0
    %2878 = vmatprep.subr.mxu0 0.0
    %2879 = vmatpush1.msra.mxu0 0.0
    %2880 = vmatprep.subr.mxu0 0.0
    %2881 = vmatpush1.msra.mxu0 0.0
    %2882 = vmatprep.subr.mxu0 0.0
    %2883 = vmatpush1.msra.mxu0 0.0
    %2884 = vmatprep.subr.mxu0 0.0
    %2885 = vmatpush1.msra.mxu0 0.0
    %2886 = vmatprep.subr.mxu0 0.0
    %2887 = vmatpush1.msra.mxu0 0.0
    %2888 = vmatprep.subr.mxu0 0.0
    %2889 = vmatpush1.msra.mxu0 0.0
    %2890 = vmatprep.subr.mxu0 0.0
    %2891 = vmatpush1.msra.mxu0 0.0
    %2892 = vmatprep.subr.mxu0 0.0
    %2893 = vmatpush1.msra.mxu0 0.0
    %2894 = vmatprep.subr.mxu0 0.0
    %2895 = vmatpush1.msra.mxu0 0.0
    %2896 = vmatprep.subr.mxu0 0.0
    %2897 = vmatpush1.msra.mxu0 0.0
    %2898 = vmatprep.subr.mxu0 0.0
    %2899 = vmatpush1.msra.mxu0 0.0
    %2900 = vmatprep.subr.mxu0 0.0
    %2901 = vmatpush1.msra.mxu0 0.0
    %2902 = vmatprep.subr.mxu0 0.0
    %2903 = vmatpush1.msra.mxu0 0.0
    %2904 = vmatprep.subr.mxu0 0.0
    %2905 = vmatpush1.msra.mxu0 0.0
    %2906 = vmatprep.subr.mxu0 0.0
    %2907 = vmatpush1.msra.mxu0 0.0
    %2908 = vmatprep.subr.mxu0 0.0
    %2909 = vmatpush1.msra.mxu0 0.0
    %2910 = vmatprep.subr.mxu0 0.0
    %2911 = vmatpush1.msra.mxu0 0.0
    %2912 = vmatprep.subr.mxu0 0.0
    %2913 = vmatpush1.msra.mxu0 0.0
    %2914 = vmatprep.subr.mxu0 0.0
    %2915 = vmatpush1.msra.mxu0 0.0
    %2916 = vmatprep.subr.mxu0 0.0
    %2917 = vmatpush1.msra.mxu0 0.0
    %2918 = vmatprep.subr.mxu0 0.0
    %2919 = vmatpush1.msra.mxu0 0.0
    %2920 = vmatprep.subr.mxu0 0.0
    %2921 = vmatpush1.msra.mxu0 0.0
    %2922 = vmatprep.mubr.f32.mxu0 0.0
    %2923 = vmatmul.mubr.f32.gmra.mrb[0].mxu0 %v2856
    %v2924 = vpop.f32.mrb[0].mxu0
    %v2925 = vadd.f32 %v2852, %v2924
    %v2926 = vpop.f32.mrb[0].mxu0
    %2927 = vdwg.mxu0
    %v2928 = vxor.u32 %v2925, 2147483648
    %v2929 = vmul.f32 %v2928, 1.442695
    %v2930 = vpow.pop %v2929
    %v2931 = vadd.f32 %v2930, 1.0
    %v2932 = vrcp.pop %v2931
    %v2933 = vmul.f32 1.0, %v2932
    %2934 = vst [vmem:[#allocation2] sm:$0x1] %v1861
    %2935 = vst [vmem:[#allocation2 + $0x1] sm:$0x7] %v2933
    // Predicated region
    $region14: #{tpu_custom_call.1} parent=1 // pred_check
      _
    $region15: #{tpu_custom_call.1} parent=1 // pred_check_branch
      %2937 = sbr.rel (0) target = $region17
    $region16: #{tpu_custom_call.1} parent=1 // pred_region
      %s2939 = ssub.s32 64, 64
      %2940 = vsyncadd [#allocation3], %s2939
      %s2942 = sshll.u32 [#allocation2], 4
      %s2943 = int_to_ptr.vmem [resolvable:$true] %s2942
      %2945 = dma.vmem_to_hbm [thread:$0]  %s2943, 64, %s3, [#allocation3]
    $region17: #{tpu_custom_call.1} parent=1 // pred_fallthru
      _
    // Predicated region
    $region18: #{tpu_custom_call.1} parent=1 // pred_check
      _
    $region19: #{tpu_custom_call.1} parent=1 // pred_check_branch
      %2947 = sbr.rel (0) target = $region21
    $region20: #{tpu_custom_call.1} parent=1 // pred_region
      %2948 = dma.done [#allocation3], 64
    $region21: #{tpu_custom_call.1} parent=1 // pred_fallthru
      _
    %2949 = vsyncpa [#allocation3], 1

</llo_original>
